<compile_context>
chip_gen: v5e
topology: v5e:2x2
jax: 0.10.0
libtpu: 0.0.40
codegen_flags: <defaults>
</compile_context>

<pallas_src>
import jax
import jax.numpy as jnp
from jax.experimental import pallas as pl
from jax.experimental.pallas import tpu as pltpu


def conv_sub_relu_kernel(x_ref, w_ref, b_ref, o_ref, xs_ref, act_ref):
    # x_ref:  (1, Cin, H, W)            VMEM  (one image of the batch)
    # w_ref:  (Cin*K*K, Cout*Wout)      VMEM  (lane-packed weights, row-major (ci,dy,dx))
    # b_ref:  (1, Cout*Wout)            VMEM  (lane-packed bias)
    # o_ref:  (1, Cout, Hout, Wout)     VMEM
    # xs_ref: (Cin*K, H, Cout*Wout)     VMEM scratch: dx-shifted, Cout-replicated slabs
    # act_ref:(Hout, Cout*Wout)         VMEM scratch: packed activation for unpacking
    _, Cin, H, W = x_ref.shape
    _, Cout, Hout, Wout = o_ref.shape
    K = H - Hout + 1
    CW = Cout * Wout

    # ---- Phase 1: build dx-shifted, lane-packed input slabs (once per image).
    # 15 lane-offset loads + 45 small masked stores; keeps every dx shift out
    # of the MAC bundle stream.
    for ci in range(Cin):
        for dx in range(K):
            win = x_ref[0, ci, :, dx:dx + Wout]            # (H, Wout)
            for co in range(Cout):
                xs_ref[ci * K + dx, :, co * Wout:(co + 1) * Wout] = win

    # ---- Phase 2: MAC stream on the lane-packed accumulator.
    # acc[h, co*Wout + j] = bias[co] + sum_{ci,dy,dx} w[co,ci,dy,dx] * x[ci,dy+h,dx+j]
    acc = jnp.broadcast_to(b_ref[...], (Hout, CW)).astype(jnp.float32)
    for ci in range(Cin):
        for dx in range(K):
            plane = ci * K + dx
            for dy in range(K):
                slab = xs_ref[plane, dy:dy + Hout, :]              # (Hout, CW), lane-aligned
                w_row = w_ref[pl.ds((ci * K + dy) * K + dx, 1), :]  # (1, CW), no scalar splats
                acc = acc + w_row * slab

    # v1 = v0 - v0 ; v2 = relu(v1)   (kept so NaN/Inf propagation matches torch)
    act_ref[...] = jnp.maximum(acc - acc, 0.0)

    # ---- Phase 3: unpack lanes -> (Cout, Hout, Wout).  Ref-sliced loads/stores
    # (lane offsets handled by masked vld/vst), batch dim already per-grid-step.
    for co in range(Cout):
        o_ref[0, co, :, :] = act_ref[:, co * Wout:(co + 1) * Wout]


def batched_forward(x, weight, bias):
    """x: (B, Cin, H, W), weight: (Cout, Cin, K, K), bias: (Cout,)
    -> (B, Cout, Hout, Wout).  One image per grid step, batch axis parallel."""
    B, Cin, H, W = x.shape
    Cout, _, K, _ = weight.shape
    Hout, Wout = H - K + 1, W - K + 1
    CKK = Cin * K * K
    CW = Cout * Wout

    # Pre-arrange parameters once (tiny, parameter-side, constant-foldable):
    #   w_packed[(ci*K+dy)*K+dx, co*Wout + j] = weight[co, ci, dy, dx]
    #   b_packed[0, co*Wout + j]              = bias[co]
    w_packed = jnp.repeat(
        jnp.transpose(weight, (1, 2, 3, 0)).reshape(CKK, Cout), Wout, axis=1)
    b_packed = jnp.repeat(bias, Wout)[None, :]

    return pl.pallas_call(
        conv_sub_relu_kernel,
        out_shape=jax.ShapeDtypeStruct((B, Cout, Hout, Wout), jnp.float32),
        grid_spec=pltpu.PrefetchScalarGridSpec(
            num_scalar_prefetch=0,
            grid=(B,),
            in_specs=[
                pl.BlockSpec((1, Cin, H, W), lambda b: (b, 0, 0, 0)),  # one image
                pl.BlockSpec((CKK, CW), lambda b: (0, 0)),             # packed weights
                pl.BlockSpec((1, CW), lambda b: (0, 0)),               # packed bias
            ],
            out_specs=pl.BlockSpec((1, Cout, Hout, Wout), lambda b: (b, 0, 0, 0)),
            scratch_shapes=[
                pltpu.VMEM((Cin * K, H, CW), jnp.float32),   # shifted/packed slabs
                pltpu.VMEM((Hout, CW), jnp.float32),         # packed activation
            ],
        ),
        compiler_params=pltpu.CompilerParams(
            dimension_semantics=("parallel",),   # shards batch over v7x's 2 TCs
        ),
    )(x, w_packed, b_packed)


def model_forward(x, weight, bias):
    """Exact module semantics: x (1, Cin, H, W) -> squeeze(relu(conv(x)-conv(x)), 0)."""
    out = batched_forward(x, weight, bias)
    return jnp.squeeze(out, 0)   # free metadata reshape of the leading 1


if __name__ == "__main__":
    key = jax.random.PRNGKey(0)
    kx, kw, kb = jax.random.split(key, 3)

    B, Cin, Cout, K, H, W = 2, 3, 3, 5, 16, 16
    x = jax.random.normal(kx, (B, Cin, H, W), dtype=jnp.float32)
    # Deterministic synthetic parameters (shapes per Conv2d(3, 3, K)).
    weight = jax.random.normal(kw, (Cout, Cin, K, K), dtype=jnp.float32) * 0.1
    bias = jax.random.normal(kb, (Cout,), dtype=jnp.float32) * 0.1

    Hout, Wout = H - K + 1, W - K + 1

    # Batched path (amortizes launch overhead, uses the parallel grid axis).
    out_b = jax.block_until_ready(jax.jit(batched_forward)(x, weight, bias))
    assert out_b.shape == (B, Cout, Hout, Wout)
    # v0 - v0 then relu is exactly zero for finite inputs.
    assert bool(jnp.all(out_b == 0.0))

    # Module-semantics path (batch=1 input, squeezed output).
    out_s = jax.block_until_ready(jax.jit(model_forward)(x[:1], weight, bias))
    assert out_s.shape == (Cout, Hout, Wout)
    assert bool(jnp.all(out_s == 0.0))

    print("KERNEL_OK")
</pallas_src>

<mosaic_0001>
module attributes {stable_mosaic.version = 11 : i64} {
  func.func @conv_sub_relu_kernel(%arg0: i32, %arg1: memref<1x3x16x16xf32, #tpu.memory_space<vmem>>, %arg2: memref<75x36xf32, #tpu.memory_space<vmem>>, %arg3: memref<1x36xf32, #tpu.memory_space<vmem>>, %arg4: memref<1x3x12x12xf32, #tpu.memory_space<vmem>>, %arg5: memref<15x16x36xf32, #tpu.memory_space<vmem>>, %arg6: memref<12x36xf32, #tpu.memory_space<vmem>>) attributes {dimension_semantics = [#tpu.dimension_semantics<parallel>], iteration_bounds = array<i64: 2>, scalar_prefetch = 0 : i64, scratch_operands = 2 : i64, tpu.core_type = #tpu.core_type<tc>, window_params = [{transform_indices = @transform_0, window_bounds = array<i64: 1, 3, 16, 16>}, {pipeline_mode = #tpu.pipeline_mode<synchronous>, transform_indices = @transform_1, window_bounds = array<i64: 75, 36>}, {pipeline_mode = #tpu.pipeline_mode<synchronous>, transform_indices = @transform_2, window_bounds = array<i64: 1, 36>}, {transform_indices = @transform_3, window_bounds = array<i64: 1, 3, 12, 12>}]} {
    %c0 = arith.constant 0 : index
    %c0_0 = arith.constant 0 : index
    %c0_1 = arith.constant 0 : index
    %c0_2 = arith.constant 0 : index
    %0 = vector.load %arg1[%c0, %c0_0, %c0_1, %c0_2] : memref<1x3x16x16xf32, #tpu.memory_space<vmem>>, vector<1x1x16x12xf32>
    %1 = vector.shape_cast %0 : vector<1x1x16x12xf32> to vector<16x12xf32>
    %c0_3 = arith.constant 0 : index
    %c0_4 = arith.constant 0 : index
    %c0_5 = arith.constant 0 : index
    %2 = vector.load %arg5[%c0_3, %c0_4, %c0_5] : memref<15x16x36xf32, #tpu.memory_space<vmem>>, vector<1x16x12xf32>
    %3 = vector.shape_cast %2 : vector<1x16x12xf32> to vector<16x12xf32>
    %4 = vector.shape_cast %1 : vector<16x12xf32> to vector<1x16x12xf32>
    tpu.vector_store %arg5[%c0_3, %c0_4, %c0_5], %4 {strides = array<i32>} : memref<15x16x36xf32, #tpu.memory_space<vmem>>, vector<1x16x12xf32>,
    %c0_6 = arith.constant 0 : index
    %c0_7 = arith.constant 0 : index
    %c12 = arith.constant 12 : index
    %5 = vector.load %arg5[%c0_6, %c0_7, %c12] : memref<15x16x36xf32, #tpu.memory_space<vmem>>, vector<1x16x12xf32>
    %6 = vector.shape_cast %5 : vector<1x16x12xf32> to vector<16x12xf32>
    %7 = vector.shape_cast %1 : vector<16x12xf32> to vector<1x16x12xf32>
    tpu.vector_store %arg5[%c0_6, %c0_7, %c12], %7 {strides = array<i32>} : memref<15x16x36xf32, #tpu.memory_space<vmem>>, vector<1x16x12xf32>,
    %c0_8 = arith.constant 0 : index
    %c0_9 = arith.constant 0 : index
    %c24 = arith.constant 24 : index
    %8 = vector.load %arg5[%c0_8, %c0_9, %c24] : memref<15x16x36xf32, #tpu.memory_space<vmem>>, vector<1x16x12xf32>
    %9 = vector.shape_cast %8 : vector<1x16x12xf32> to vector<16x12xf32>
    %10 = vector.shape_cast %1 : vector<16x12xf32> to vector<1x16x12xf32>
    tpu.vector_store %arg5[%c0_8, %c0_9, %c24], %10 {strides = array<i32>} : memref<15x16x36xf32, #tpu.memory_space<vmem>>, vector<1x16x12xf32>,
    %c0_10 = arith.constant 0 : index
    %c0_11 = arith.constant 0 : index
    %c0_12 = arith.constant 0 : index
    %c1 = arith.constant 1 : index
    %11 = vector.load %arg1[%c0_10, %c0_11, %c0_12, %c1] : memref<1x3x16x16xf32, #tpu.memory_space<vmem>>, vector<1x1x16x12xf32>
    %12 = vector.shape_cast %11 : vector<1x1x16x12xf32> to vector<16x12xf32>
    %c1_13 = arith.constant 1 : index
    %c0_14 = arith.constant 0 : index
    %c0_15 = arith.constant 0 : index
    %13 = vector.load %arg5[%c1_13, %c0_14, %c0_15] : memref<15x16x36xf32, #tpu.memory_space<vmem>>, vector<1x16x12xf32>
    %14 = vector.shape_cast %13 : vector<1x16x12xf32> to vector<16x12xf32>
    %15 = vector.shape_cast %12 : vector<16x12xf32> to vector<1x16x12xf32>
    tpu.vector_store %arg5[%c1_13, %c0_14, %c0_15], %15 {strides = array<i32>} : memref<15x16x36xf32, #tpu.memory_space<vmem>>, vector<1x16x12xf32>,
    %c1_16 = arith.constant 1 : index
    %c0_17 = arith.constant 0 : index
    %c12_18 = arith.constant 12 : index
    %16 = vector.load %arg5[%c1_16, %c0_17, %c12_18] : memref<15x16x36xf32, #tpu.memory_space<vmem>>, vector<1x16x12xf32>
    %17 = vector.shape_cast %16 : vector<1x16x12xf32> to vector<16x12xf32>
    %18 = vector.shape_cast %12 : vector<16x12xf32> to vector<1x16x12xf32>
    tpu.vector_store %arg5[%c1_16, %c0_17, %c12_18], %18 {strides = array<i32>} : memref<15x16x36xf32, #tpu.memory_space<vmem>>, vector<1x16x12xf32>,
    %c1_19 = arith.constant 1 : index
    %c0_20 = arith.constant 0 : index
    %c24_21 = arith.constant 24 : index
    %19 = vector.load %arg5[%c1_19, %c0_20, %c24_21] : memref<15x16x36xf32, #tpu.memory_space<vmem>>, vector<1x16x12xf32>
    %20 = vector.shape_cast %19 : vector<1x16x12xf32> to vector<16x12xf32>
    %21 = vector.shape_cast %12 : vector<16x12xf32> to vector<1x16x12xf32>
    tpu.vector_store %arg5[%c1_19, %c0_20, %c24_21], %21 {strides = array<i32>} : memref<15x16x36xf32, #tpu.memory_space<vmem>>, vector<1x16x12xf32>,
    %c0_22 = arith.constant 0 : index
    %c0_23 = arith.constant 0 : index
    %c0_24 = arith.constant 0 : index
    %c2 = arith.constant 2 : index
    %22 = vector.load %arg1[%c0_22, %c0_23, %c0_24, %c2] : memref<1x3x16x16xf32, #tpu.memory_space<vmem>>, vector<1x1x16x12xf32>
    %23 = vector.shape_cast %22 : vector<1x1x16x12xf32> to vector<16x12xf32>
    %c2_25 = arith.constant 2 : index
    %c0_26 = arith.constant 0 : index
    %c0_27 = arith.constant 0 : index
    %24 = vector.load %arg5[%c2_25, %c0_26, %c0_27] : memref<15x16x36xf32, #tpu.memory_space<vmem>>, vector<1x16x12xf32>
    %25 = vector.shape_cast %24 : vector<1x16x12xf32> to vector<16x12xf32>
    %26 = vector.shape_cast %23 : vector<16x12xf32> to vector<1x16x12xf32>
    tpu.vector_store %arg5[%c2_25, %c0_26, %c0_27], %26 {strides = array<i32>} : memref<15x16x36xf32, #tpu.memory_space<vmem>>, vector<1x16x12xf32>,
    %c2_28 = arith.constant 2 : index
    %c0_29 = arith.constant 0 : index
    %c12_30 = arith.constant 12 : index
    %27 = vector.load %arg5[%c2_28, %c0_29, %c12_30] : memref<15x16x36xf32, #tpu.memory_space<vmem>>, vector<1x16x12xf32>
    %28 = vector.shape_cast %27 : vector<1x16x12xf32> to vector<16x12xf32>
    %29 = vector.shape_cast %23 : vector<16x12xf32> to vector<1x16x12xf32>
    tpu.vector_store %arg5[%c2_28, %c0_29, %c12_30], %29 {strides = array<i32>} : memref<15x16x36xf32, #tpu.memory_space<vmem>>, vector<1x16x12xf32>,
    %c2_31 = arith.constant 2 : index
    %c0_32 = arith.constant 0 : index
    %c24_33 = arith.constant 24 : index
    %30 = vector.load %arg5[%c2_31, %c0_32, %c24_33] : memref<15x16x36xf32, #tpu.memory_space<vmem>>, vector<1x16x12xf32>
    %31 = vector.shape_cast %30 : vector<1x16x12xf32> to vector<16x12xf32>
    %32 = vector.shape_cast %23 : vector<16x12xf32> to vector<1x16x12xf32>
    tpu.vector_store %arg5[%c2_31, %c0_32, %c24_33], %32 {strides = array<i32>} : memref<15x16x36xf32, #tpu.memory_space<vmem>>, vector<1x16x12xf32>,
    %c0_34 = arith.constant 0 : index
    %c0_35 = arith.constant 0 : index
    %c0_36 = arith.constant 0 : index
    %c3 = arith.constant 3 : index
    %33 = vector.load %arg1[%c0_34, %c0_35, %c0_36, %c3] : memref<1x3x16x16xf32, #tpu.memory_space<vmem>>, vector<1x1x16x12xf32>
    %34 = vector.shape_cast %33 : vector<1x1x16x12xf32> to vector<16x12xf32>
    %c3_37 = arith.constant 3 : index
    %c0_38 = arith.constant 0 : index
    %c0_39 = arith.constant 0 : index
    %35 = vector.load %arg5[%c3_37, %c0_38, %c0_39] : memref<15x16x36xf32, #tpu.memory_space<vmem>>, vector<1x16x12xf32>
    %36 = vector.shape_cast %35 : vector<1x16x12xf32> to vector<16x12xf32>
    %37 = vector.shape_cast %34 : vector<16x12xf32> to vector<1x16x12xf32>
    tpu.vector_store %arg5[%c3_37, %c0_38, %c0_39], %37 {strides = array<i32>} : memref<15x16x36xf32, #tpu.memory_space<vmem>>, vector<1x16x12xf32>,
    %c3_40 = arith.constant 3 : index
    %c0_41 = arith.constant 0 : index
    %c12_42 = arith.constant 12 : index
    %38 = vector.load %arg5[%c3_40, %c0_41, %c12_42] : memref<15x16x36xf32, #tpu.memory_space<vmem>>, vector<1x16x12xf32>
    %39 = vector.shape_cast %38 : vector<1x16x12xf32> to vector<16x12xf32>
    %40 = vector.shape_cast %34 : vector<16x12xf32> to vector<1x16x12xf32>
    tpu.vector_store %arg5[%c3_40, %c0_41, %c12_42], %40 {strides = array<i32>} : memref<15x16x36xf32, #tpu.memory_space<vmem>>, vector<1x16x12xf32>,
    %c3_43 = arith.constant 3 : index
    %c0_44 = arith.constant 0 : index
    %c24_45 = arith.constant 24 : index
    %41 = vector.load %arg5[%c3_43, %c0_44, %c24_45] : memref<15x16x36xf32, #tpu.memory_space<vmem>>, vector<1x16x12xf32>
    %42 = vector.shape_cast %41 : vector<1x16x12xf32> to vector<16x12xf32>
    %43 = vector.shape_cast %34 : vector<16x12xf32> to vector<1x16x12xf32>
    tpu.vector_store %arg5[%c3_43, %c0_44, %c24_45], %43 {strides = array<i32>} : memref<15x16x36xf32, #tpu.memory_space<vmem>>, vector<1x16x12xf32>,
    %c0_46 = arith.constant 0 : index
    %c0_47 = arith.constant 0 : index
    %c0_48 = arith.constant 0 : index
    %c4 = arith.constant 4 : index
    %44 = vector.load %arg1[%c0_46, %c0_47, %c0_48, %c4] : memref<1x3x16x16xf32, #tpu.memory_space<vmem>>, vector<1x1x16x12xf32>
    %45 = vector.shape_cast %44 : vector<1x1x16x12xf32> to vector<16x12xf32>
    %c4_49 = arith.constant 4 : index
    %c0_50 = arith.constant 0 : index
    %c0_51 = arith.constant 0 : index
    %46 = vector.load %arg5[%c4_49, %c0_50, %c0_51] : memref<15x16x36xf32, #tpu.memory_space<vmem>>, vector<1x16x12xf32>
    %47 = vector.shape_cast %46 : vector<1x16x12xf32> to vector<16x12xf32>
    %48 = vector.shape_cast %45 : vector<16x12xf32> to vector<1x16x12xf32>
    tpu.vector_store %arg5[%c4_49, %c0_50, %c0_51], %48 {strides = array<i32>} : memref<15x16x36xf32, #tpu.memory_space<vmem>>, vector<1x16x12xf32>,
    %c4_52 = arith.constant 4 : index
    %c0_53 = arith.constant 0 : index
    %c12_54 = arith.constant 12 : index
    %49 = vector.load %arg5[%c4_52, %c0_53, %c12_54] : memref<15x16x36xf32, #tpu.memory_space<vmem>>, vector<1x16x12xf32>
    %50 = vector.shape_cast %49 : vector<1x16x12xf32> to vector<16x12xf32>
    %51 = vector.shape_cast %45 : vector<16x12xf32> to vector<1x16x12xf32>
    tpu.vector_store %arg5[%c4_52, %c0_53, %c12_54], %51 {strides = array<i32>} : memref<15x16x36xf32, #tpu.memory_space<vmem>>, vector<1x16x12xf32>,
    %c4_55 = arith.constant 4 : index
    %c0_56 = arith.constant 0 : index
    %c24_57 = arith.constant 24 : index
    %52 = vector.load %arg5[%c4_55, %c0_56, %c24_57] : memref<15x16x36xf32, #tpu.memory_space<vmem>>, vector<1x16x12xf32>
    %53 = vector.shape_cast %52 : vector<1x16x12xf32> to vector<16x12xf32>
    %54 = vector.shape_cast %45 : vector<16x12xf32> to vector<1x16x12xf32>
    tpu.vector_store %arg5[%c4_55, %c0_56, %c24_57], %54 {strides = array<i32>} : memref<15x16x36xf32, #tpu.memory_space<vmem>>, vector<1x16x12xf32>,
    %c0_58 = arith.constant 0 : index
    %c1_59 = arith.constant 1 : index
    %c0_60 = arith.constant 0 : index
    %c0_61 = arith.constant 0 : index
    %55 = vector.load %arg1[%c0_58, %c1_59, %c0_60, %c0_61] : memref<1x3x16x16xf32, #tpu.memory_space<vmem>>, vector<1x1x16x12xf32>
    %56 = vector.shape_cast %55 : vector<1x1x16x12xf32> to vector<16x12xf32>
    %c5 = arith.constant 5 : index
    %c0_62 = arith.constant 0 : index
    %c0_63 = arith.constant 0 : index
    %57 = vector.load %arg5[%c5, %c0_62, %c0_63] : memref<15x16x36xf32, #tpu.memory_space<vmem>>, vector<1x16x12xf32>
    %58 = vector.shape_cast %57 : vector<1x16x12xf32> to vector<16x12xf32>
    %59 = vector.shape_cast %56 : vector<16x12xf32> to vector<1x16x12xf32>
    tpu.vector_store %arg5[%c5, %c0_62, %c0_63], %59 {strides = array<i32>} : memref<15x16x36xf32, #tpu.memory_space<vmem>>, vector<1x16x12xf32>,
    %c5_64 = arith.constant 5 : index
    %c0_65 = arith.constant 0 : index
    %c12_66 = arith.constant 12 : index
    %60 = vector.load %arg5[%c5_64, %c0_65, %c12_66] : memref<15x16x36xf32, #tpu.memory_space<vmem>>, vector<1x16x12xf32>
    %61 = vector.shape_cast %60 : vector<1x16x12xf32> to vector<16x12xf32>
    %62 = vector.shape_cast %56 : vector<16x12xf32> to vector<1x16x12xf32>
    tpu.vector_store %arg5[%c5_64, %c0_65, %c12_66], %62 {strides = array<i32>} : memref<15x16x36xf32, #tpu.memory_space<vmem>>, vector<1x16x12xf32>,
    %c5_67 = arith.constant 5 : index
    %c0_68 = arith.constant 0 : index
    %c24_69 = arith.constant 24 : index
    %63 = vector.load %arg5[%c5_67, %c0_68, %c24_69] : memref<15x16x36xf32, #tpu.memory_space<vmem>>, vector<1x16x12xf32>
    %64 = vector.shape_cast %63 : vector<1x16x12xf32> to vector<16x12xf32>
    %65 = vector.shape_cast %56 : vector<16x12xf32> to vector<1x16x12xf32>
    tpu.vector_store %arg5[%c5_67, %c0_68, %c24_69], %65 {strides = array<i32>} : memref<15x16x36xf32, #tpu.memory_space<vmem>>, vector<1x16x12xf32>,
    %c0_70 = arith.constant 0 : index
    %c1_71 = arith.constant 1 : index
    %c0_72 = arith.constant 0 : index
    %c1_73 = arith.constant 1 : index
    %66 = vector.load %arg1[%c0_70, %c1_71, %c0_72, %c1_73] : memref<1x3x16x16xf32, #tpu.memory_space<vmem>>, vector<1x1x16x12xf32>
    %67 = vector.shape_cast %66 : vector<1x1x16x12xf32> to vector<16x12xf32>
    %c6 = arith.constant 6 : index
    %c0_74 = arith.constant 0 : index
    %c0_75 = arith.constant 0 : index
    %68 = vector.load %arg5[%c6, %c0_74, %c0_75] : memref<15x16x36xf32, #tpu.memory_space<vmem>>, vector<1x16x12xf32>
    %69 = vector.shape_cast %68 : vector<1x16x12xf32> to vector<16x12xf32>
    %70 = vector.shape_cast %67 : vector<16x12xf32> to vector<1x16x12xf32>
    tpu.vector_store %arg5[%c6, %c0_74, %c0_75], %70 {strides = array<i32>} : memref<15x16x36xf32, #tpu.memory_space<vmem>>, vector<1x16x12xf32>,
    %c6_76 = arith.constant 6 : index
    %c0_77 = arith.constant 0 : index
    %c12_78 = arith.constant 12 : index
    %71 = vector.load %arg5[%c6_76, %c0_77, %c12_78] : memref<15x16x36xf32, #tpu.memory_space<vmem>>, vector<1x16x12xf32>
    %72 = vector.shape_cast %71 : vector<1x16x12xf32> to vector<16x12xf32>
    %73 = vector.shape_cast %67 : vector<16x12xf32> to vector<1x16x12xf32>
    tpu.vector_store %arg5[%c6_76, %c0_77, %c12_78], %73 {strides = array<i32>} : memref<15x16x36xf32, #tpu.memory_space<vmem>>, vector<1x16x12xf32>,
    %c6_79 = arith.constant 6 : index
    %c0_80 = arith.constant 0 : index
    %c24_81 = arith.constant 24 : index
    %74 = vector.load %arg5[%c6_79, %c0_80, %c24_81] : memref<15x16x36xf32, #tpu.memory_space<vmem>>, vector<1x16x12xf32>
    %75 = vector.shape_cast %74 : vector<1x16x12xf32> to vector<16x12xf32>
    %76 = vector.shape_cast %67 : vector<16x12xf32> to vector<1x16x12xf32>
    tpu.vector_store %arg5[%c6_79, %c0_80, %c24_81], %76 {strides = array<i32>} : memref<15x16x36xf32, #tpu.memory_space<vmem>>, vector<1x16x12xf32>,
    %c0_82 = arith.constant 0 : index
    %c1_83 = arith.constant 1 : index
    %c0_84 = arith.constant 0 : index
    %c2_85 = arith.constant 2 : index
    %77 = vector.load %arg1[%c0_82, %c1_83, %c0_84, %c2_85] : memref<1x3x16x16xf32, #tpu.memory_space<vmem>>, vector<1x1x16x12xf32>
    %78 = vector.shape_cast %77 : vector<1x1x16x12xf32> to vector<16x12xf32>
    %c7 = arith.constant 7 : index
    %c0_86 = arith.constant 0 : index
    %c0_87 = arith.constant 0 : index
    %79 = vector.load %arg5[%c7, %c0_86, %c0_87] : memref<15x16x36xf32, #tpu.memory_space<vmem>>, vector<1x16x12xf32>
    %80 = vector.shape_cast %79 : vector<1x16x12xf32> to vector<16x12xf32>
    %81 = vector.shape_cast %78 : vector<16x12xf32> to vector<1x16x12xf32>
    tpu.vector_store %arg5[%c7, %c0_86, %c0_87], %81 {strides = array<i32>} : memref<15x16x36xf32, #tpu.memory_space<vmem>>, vector<1x16x12xf32>,
    %c7_88 = arith.constant 7 : index
    %c0_89 = arith.constant 0 : index
    %c12_90 = arith.constant 12 : index
    %82 = vector.load %arg5[%c7_88, %c0_89, %c12_90] : memref<15x16x36xf32, #tpu.memory_space<vmem>>, vector<1x16x12xf32>
    %83 = vector.shape_cast %82 : vector<1x16x12xf32> to vector<16x12xf32>
    %84 = vector.shape_cast %78 : vector<16x12xf32> to vector<1x16x12xf32>
    tpu.vector_store %arg5[%c7_88, %c0_89, %c12_90], %84 {strides = array<i32>} : memref<15x16x36xf32, #tpu.memory_space<vmem>>, vector<1x16x12xf32>,
    %c7_91 = arith.constant 7 : index
    %c0_92 = arith.constant 0 : index
    %c24_93 = arith.constant 24 : index
    %85 = vector.load %arg5[%c7_91, %c0_92, %c24_93] : memref<15x16x36xf32, #tpu.memory_space<vmem>>, vector<1x16x12xf32>
    %86 = vector.shape_cast %85 : vector<1x16x12xf32> to vector<16x12xf32>
    %87 = vector.shape_cast %78 : vector<16x12xf32> to vector<1x16x12xf32>
    tpu.vector_store %arg5[%c7_91, %c0_92, %c24_93], %87 {strides = array<i32>} : memref<15x16x36xf32, #tpu.memory_space<vmem>>, vector<1x16x12xf32>,
    %c0_94 = arith.constant 0 : index
    %c1_95 = arith.constant 1 : index
    %c0_96 = arith.constant 0 : index
    %c3_97 = arith.constant 3 : index
    %88 = vector.load %arg1[%c0_94, %c1_95, %c0_96, %c3_97] : memref<1x3x16x16xf32, #tpu.memory_space<vmem>>, vector<1x1x16x12xf32>
    %89 = vector.shape_cast %88 : vector<1x1x16x12xf32> to vector<16x12xf32>
    %c8 = arith.constant 8 : index
    %c0_98 = arith.constant 0 : index
    %c0_99 = arith.constant 0 : index
    %90 = vector.load %arg5[%c8, %c0_98, %c0_99] : memref<15x16x36xf32, #tpu.memory_space<vmem>>, vector<1x16x12xf32>
    %91 = vector.shape_cast %90 : vector<1x16x12xf32> to vector<16x12xf32>
    %92 = vector.shape_cast %89 : vector<16x12xf32> to vector<1x16x12xf32>
    tpu.vector_store %arg5[%c8, %c0_98, %c0_99], %92 {strides = array<i32>} : memref<15x16x36xf32, #tpu.memory_space<vmem>>, vector<1x16x12xf32>,
    %c8_100 = arith.constant 8 : index
    %c0_101 = arith.constant 0 : index
    %c12_102 = arith.constant 12 : index
    %93 = vector.load %arg5[%c8_100, %c0_101, %c12_102] : memref<15x16x36xf32, #tpu.memory_space<vmem>>, vector<1x16x12xf32>
    %94 = vector.shape_cast %93 : vector<1x16x12xf32> to vector<16x12xf32>
    %95 = vector.shape_cast %89 : vector<16x12xf32> to vector<1x16x12xf32>
    tpu.vector_store %arg5[%c8_100, %c0_101, %c12_102], %95 {strides = array<i32>} : memref<15x16x36xf32, #tpu.memory_space<vmem>>, vector<1x16x12xf32>,
    %c8_103 = arith.constant 8 : index
    %c0_104 = arith.constant 0 : index
    %c24_105 = arith.constant 24 : index
    %96 = vector.load %arg5[%c8_103, %c0_104, %c24_105] : memref<15x16x36xf32, #tpu.memory_space<vmem>>, vector<1x16x12xf32>
    %97 = vector.shape_cast %96 : vector<1x16x12xf32> to vector<16x12xf32>
    %98 = vector.shape_cast %89 : vector<16x12xf32> to vector<1x16x12xf32>
    tpu.vector_store %arg5[%c8_103, %c0_104, %c24_105], %98 {strides = array<i32>} : memref<15x16x36xf32, #tpu.memory_space<vmem>>, vector<1x16x12xf32>,
    %c0_106 = arith.constant 0 : index
    %c1_107 = arith.constant 1 : index
    %c0_108 = arith.constant 0 : index
    %c4_109 = arith.constant 4 : index
    %99 = vector.load %arg1[%c0_106, %c1_107, %c0_108, %c4_109] : memref<1x3x16x16xf32, #tpu.memory_space<vmem>>, vector<1x1x16x12xf32>
    %100 = vector.shape_cast %99 : vector<1x1x16x12xf32> to vector<16x12xf32>
    %c9 = arith.constant 9 : index
    %c0_110 = arith.constant 0 : index
    %c0_111 = arith.constant 0 : index
    %101 = vector.load %arg5[%c9, %c0_110, %c0_111] : memref<15x16x36xf32, #tpu.memory_space<vmem>>, vector<1x16x12xf32>
    %102 = vector.shape_cast %101 : vector<1x16x12xf32> to vector<16x12xf32>
    %103 = vector.shape_cast %100 : vector<16x12xf32> to vector<1x16x12xf32>
    tpu.vector_store %arg5[%c9, %c0_110, %c0_111], %103 {strides = array<i32>} : memref<15x16x36xf32, #tpu.memory_space<vmem>>, vector<1x16x12xf32>,
    %c9_112 = arith.constant 9 : index
    %c0_113 = arith.constant 0 : index
    %c12_114 = arith.constant 12 : index
    %104 = vector.load %arg5[%c9_112, %c0_113, %c12_114] : memref<15x16x36xf32, #tpu.memory_space<vmem>>, vector<1x16x12xf32>
    %105 = vector.shape_cast %104 : vector<1x16x12xf32> to vector<16x12xf32>
    %106 = vector.shape_cast %100 : vector<16x12xf32> to vector<1x16x12xf32>
    tpu.vector_store %arg5[%c9_112, %c0_113, %c12_114], %106 {strides = array<i32>} : memref<15x16x36xf32, #tpu.memory_space<vmem>>, vector<1x16x12xf32>,
    %c9_115 = arith.constant 9 : index
    %c0_116 = arith.constant 0 : index
    %c24_117 = arith.constant 24 : index
    %107 = vector.load %arg5[%c9_115, %c0_116, %c24_117] : memref<15x16x36xf32, #tpu.memory_space<vmem>>, vector<1x16x12xf32>
    %108 = vector.shape_cast %107 : vector<1x16x12xf32> to vector<16x12xf32>
    %109 = vector.shape_cast %100 : vector<16x12xf32> to vector<1x16x12xf32>
    tpu.vector_store %arg5[%c9_115, %c0_116, %c24_117], %109 {strides = array<i32>} : memref<15x16x36xf32, #tpu.memory_space<vmem>>, vector<1x16x12xf32>,
    %c0_118 = arith.constant 0 : index
    %c2_119 = arith.constant 2 : index
    %c0_120 = arith.constant 0 : index
    %c0_121 = arith.constant 0 : index
    %110 = vector.load %arg1[%c0_118, %c2_119, %c0_120, %c0_121] : memref<1x3x16x16xf32, #tpu.memory_space<vmem>>, vector<1x1x16x12xf32>
    %111 = vector.shape_cast %110 : vector<1x1x16x12xf32> to vector<16x12xf32>
    %c10 = arith.constant 10 : index
    %c0_122 = arith.constant 0 : index
    %c0_123 = arith.constant 0 : index
    %112 = vector.load %arg5[%c10, %c0_122, %c0_123] : memref<15x16x36xf32, #tpu.memory_space<vmem>>, vector<1x16x12xf32>
    %113 = vector.shape_cast %112 : vector<1x16x12xf32> to vector<16x12xf32>
    %114 = vector.shape_cast %111 : vector<16x12xf32> to vector<1x16x12xf32>
    tpu.vector_store %arg5[%c10, %c0_122, %c0_123], %114 {strides = array<i32>} : memref<15x16x36xf32, #tpu.memory_space<vmem>>, vector<1x16x12xf32>,
    %c10_124 = arith.constant 10 : index
    %c0_125 = arith.constant 0 : index
    %c12_126 = arith.constant 12 : index
    %115 = vector.load %arg5[%c10_124, %c0_125, %c12_126] : memref<15x16x36xf32, #tpu.memory_space<vmem>>, vector<1x16x12xf32>
    %116 = vector.shape_cast %115 : vector<1x16x12xf32> to vector<16x12xf32>
    %117 = vector.shape_cast %111 : vector<16x12xf32> to vector<1x16x12xf32>
    tpu.vector_store %arg5[%c10_124, %c0_125, %c12_126], %117 {strides = array<i32>} : memref<15x16x36xf32, #tpu.memory_space<vmem>>, vector<1x16x12xf32>,
    %c10_127 = arith.constant 10 : index
    %c0_128 = arith.constant 0 : index
    %c24_129 = arith.constant 24 : index
    %118 = vector.load %arg5[%c10_127, %c0_128, %c24_129] : memref<15x16x36xf32, #tpu.memory_space<vmem>>, vector<1x16x12xf32>
    %119 = vector.shape_cast %118 : vector<1x16x12xf32> to vector<16x12xf32>
    %120 = vector.shape_cast %111 : vector<16x12xf32> to vector<1x16x12xf32>
    tpu.vector_store %arg5[%c10_127, %c0_128, %c24_129], %120 {strides = array<i32>} : memref<15x16x36xf32, #tpu.memory_space<vmem>>, vector<1x16x12xf32>,
    %c0_130 = arith.constant 0 : index
    %c2_131 = arith.constant 2 : index
    %c0_132 = arith.constant 0 : index
    %c1_133 = arith.constant 1 : index
    %121 = vector.load %arg1[%c0_130, %c2_131, %c0_132, %c1_133] : memref<1x3x16x16xf32, #tpu.memory_space<vmem>>, vector<1x1x16x12xf32>
    %122 = vector.shape_cast %121 : vector<1x1x16x12xf32> to vector<16x12xf32>
    %c11 = arith.constant 11 : index
    %c0_134 = arith.constant 0 : index
    %c0_135 = arith.constant 0 : index
    %123 = vector.load %arg5[%c11, %c0_134, %c0_135] : memref<15x16x36xf32, #tpu.memory_space<vmem>>, vector<1x16x12xf32>
    %124 = vector.shape_cast %123 : vector<1x16x12xf32> to vector<16x12xf32>
    %125 = vector.shape_cast %122 : vector<16x12xf32> to vector<1x16x12xf32>
    tpu.vector_store %arg5[%c11, %c0_134, %c0_135], %125 {strides = array<i32>} : memref<15x16x36xf32, #tpu.memory_space<vmem>>, vector<1x16x12xf32>,
    %c11_136 = arith.constant 11 : index
    %c0_137 = arith.constant 0 : index
    %c12_138 = arith.constant 12 : index
    %126 = vector.load %arg5[%c11_136, %c0_137, %c12_138] : memref<15x16x36xf32, #tpu.memory_space<vmem>>, vector<1x16x12xf32>
    %127 = vector.shape_cast %126 : vector<1x16x12xf32> to vector<16x12xf32>
    %128 = vector.shape_cast %122 : vector<16x12xf32> to vector<1x16x12xf32>
    tpu.vector_store %arg5[%c11_136, %c0_137, %c12_138], %128 {strides = array<i32>} : memref<15x16x36xf32, #tpu.memory_space<vmem>>, vector<1x16x12xf32>,
    %c11_139 = arith.constant 11 : index
    %c0_140 = arith.constant 0 : index
    %c24_141 = arith.constant 24 : index
    %129 = vector.load %arg5[%c11_139, %c0_140, %c24_141] : memref<15x16x36xf32, #tpu.memory_space<vmem>>, vector<1x16x12xf32>
    %130 = vector.shape_cast %129 : vector<1x16x12xf32> to vector<16x12xf32>
    %131 = vector.shape_cast %122 : vector<16x12xf32> to vector<1x16x12xf32>
    tpu.vector_store %arg5[%c11_139, %c0_140, %c24_141], %131 {strides = array<i32>} : memref<15x16x36xf32, #tpu.memory_space<vmem>>, vector<1x16x12xf32>,
    %c0_142 = arith.constant 0 : index
    %c2_143 = arith.constant 2 : index
    %c0_144 = arith.constant 0 : index
    %c2_145 = arith.constant 2 : index
    %132 = vector.load %arg1[%c0_142, %c2_143, %c0_144, %c2_145] : memref<1x3x16x16xf32, #tpu.memory_space<vmem>>, vector<1x1x16x12xf32>
    %133 = vector.shape_cast %132 : vector<1x1x16x12xf32> to vector<16x12xf32>
    %c12_146 = arith.constant 12 : index
    %c0_147 = arith.constant 0 : index
    %c0_148 = arith.constant 0 : index
    %134 = vector.load %arg5[%c12_146, %c0_147, %c0_148] : memref<15x16x36xf32, #tpu.memory_space<vmem>>, vector<1x16x12xf32>
    %135 = vector.shape_cast %134 : vector<1x16x12xf32> to vector<16x12xf32>
    %136 = vector.shape_cast %133 : vector<16x12xf32> to vector<1x16x12xf32>
    tpu.vector_store %arg5[%c12_146, %c0_147, %c0_148], %136 {strides = array<i32>} : memref<15x16x36xf32, #tpu.memory_space<vmem>>, vector<1x16x12xf32>,
    %c12_149 = arith.constant 12 : index
    %c0_150 = arith.constant 0 : index
    %c12_151 = arith.constant 12 : index
    %137 = vector.load %arg5[%c12_149, %c0_150, %c12_151] : memref<15x16x36xf32, #tpu.memory_space<vmem>>, vector<1x16x12xf32>
    %138 = vector.shape_cast %137 : vector<1x16x12xf32> to vector<16x12xf32>
    %139 = vector.shape_cast %133 : vector<16x12xf32> to vector<1x16x12xf32>
    tpu.vector_store %arg5[%c12_149, %c0_150, %c12_151], %139 {strides = array<i32>} : memref<15x16x36xf32, #tpu.memory_space<vmem>>, vector<1x16x12xf32>,
    %c12_152 = arith.constant 12 : index
    %c0_153 = arith.constant 0 : index
    %c24_154 = arith.constant 24 : index
    %140 = vector.load %arg5[%c12_152, %c0_153, %c24_154] : memref<15x16x36xf32, #tpu.memory_space<vmem>>, vector<1x16x12xf32>
    %141 = vector.shape_cast %140 : vector<1x16x12xf32> to vector<16x12xf32>
    %142 = vector.shape_cast %133 : vector<16x12xf32> to vector<1x16x12xf32>
    tpu.vector_store %arg5[%c12_152, %c0_153, %c24_154], %142 {strides = array<i32>} : memref<15x16x36xf32, #tpu.memory_space<vmem>>, vector<1x16x12xf32>,
    %c0_155 = arith.constant 0 : index
    %c2_156 = arith.constant 2 : index
    %c0_157 = arith.constant 0 : index
    %c3_158 = arith.constant 3 : index
    %143 = vector.load %arg1[%c0_155, %c2_156, %c0_157, %c3_158] : memref<1x3x16x16xf32, #tpu.memory_space<vmem>>, vector<1x1x16x12xf32>
    %144 = vector.shape_cast %143 : vector<1x1x16x12xf32> to vector<16x12xf32>
    %c13 = arith.constant 13 : index
    %c0_159 = arith.constant 0 : index
    %c0_160 = arith.constant 0 : index
    %145 = vector.load %arg5[%c13, %c0_159, %c0_160] : memref<15x16x36xf32, #tpu.memory_space<vmem>>, vector<1x16x12xf32>
    %146 = vector.shape_cast %145 : vector<1x16x12xf32> to vector<16x12xf32>
    %147 = vector.shape_cast %144 : vector<16x12xf32> to vector<1x16x12xf32>
    tpu.vector_store %arg5[%c13, %c0_159, %c0_160], %147 {strides = array<i32>} : memref<15x16x36xf32, #tpu.memory_space<vmem>>, vector<1x16x12xf32>,
    %c13_161 = arith.constant 13 : index
    %c0_162 = arith.constant 0 : index
    %c12_163 = arith.constant 12 : index
    %148 = vector.load %arg5[%c13_161, %c0_162, %c12_163] : memref<15x16x36xf32, #tpu.memory_space<vmem>>, vector<1x16x12xf32>
    %149 = vector.shape_cast %148 : vector<1x16x12xf32> to vector<16x12xf32>
    %150 = vector.shape_cast %144 : vector<16x12xf32> to vector<1x16x12xf32>
    tpu.vector_store %arg5[%c13_161, %c0_162, %c12_163], %150 {strides = array<i32>} : memref<15x16x36xf32, #tpu.memory_space<vmem>>, vector<1x16x12xf32>,
    %c13_164 = arith.constant 13 : index
    %c0_165 = arith.constant 0 : index
    %c24_166 = arith.constant 24 : index
    %151 = vector.load %arg5[%c13_164, %c0_165, %c24_166] : memref<15x16x36xf32, #tpu.memory_space<vmem>>, vector<1x16x12xf32>
    %152 = vector.shape_cast %151 : vector<1x16x12xf32> to vector<16x12xf32>
    %153 = vector.shape_cast %144 : vector<16x12xf32> to vector<1x16x12xf32>
    tpu.vector_store %arg5[%c13_164, %c0_165, %c24_166], %153 {strides = array<i32>} : memref<15x16x36xf32, #tpu.memory_space<vmem>>, vector<1x16x12xf32>,
    %c0_167 = arith.constant 0 : index
    %c2_168 = arith.constant 2 : index
    %c0_169 = arith.constant 0 : index
    %c4_170 = arith.constant 4 : index
    %154 = vector.load %arg1[%c0_167, %c2_168, %c0_169, %c4_170] : memref<1x3x16x16xf32, #tpu.memory_space<vmem>>, vector<1x1x16x12xf32>
    %155 = vector.shape_cast %154 : vector<1x1x16x12xf32> to vector<16x12xf32>
    %c14 = arith.constant 14 : index
    %c0_171 = arith.constant 0 : index
    %c0_172 = arith.constant 0 : index
    %156 = vector.load %arg5[%c14, %c0_171, %c0_172] : memref<15x16x36xf32, #tpu.memory_space<vmem>>, vector<1x16x12xf32>
    %157 = vector.shape_cast %156 : vector<1x16x12xf32> to vector<16x12xf32>
    %158 = vector.shape_cast %155 : vector<16x12xf32> to vector<1x16x12xf32>
    tpu.vector_store %arg5[%c14, %c0_171, %c0_172], %158 {strides = array<i32>} : memref<15x16x36xf32, #tpu.memory_space<vmem>>, vector<1x16x12xf32>,
    %c14_173 = arith.constant 14 : index
    %c0_174 = arith.constant 0 : index
    %c12_175 = arith.constant 12 : index
    %159 = vector.load %arg5[%c14_173, %c0_174, %c12_175] : memref<15x16x36xf32, #tpu.memory_space<vmem>>, vector<1x16x12xf32>
    %160 = vector.shape_cast %159 : vector<1x16x12xf32> to vector<16x12xf32>
    %161 = vector.shape_cast %155 : vector<16x12xf32> to vector<1x16x12xf32>
    tpu.vector_store %arg5[%c14_173, %c0_174, %c12_175], %161 {strides = array<i32>} : memref<15x16x36xf32, #tpu.memory_space<vmem>>, vector<1x16x12xf32>,
    %c14_176 = arith.constant 14 : index
    %c0_177 = arith.constant 0 : index
    %c24_178 = arith.constant 24 : index
    %162 = vector.load %arg5[%c14_176, %c0_177, %c24_178] : memref<15x16x36xf32, #tpu.memory_space<vmem>>, vector<1x16x12xf32>
    %163 = vector.shape_cast %162 : vector<1x16x12xf32> to vector<16x12xf32>
    %164 = vector.shape_cast %155 : vector<16x12xf32> to vector<1x16x12xf32>
    tpu.vector_store %arg5[%c14_176, %c0_177, %c24_178], %164 {strides = array<i32>} : memref<15x16x36xf32, #tpu.memory_space<vmem>>, vector<1x16x12xf32>,
    %c0_179 = arith.constant 0 : index
    %c0_180 = arith.constant 0 : index
    %165 = vector.load %arg3[%c0_179, %c0_180] : memref<1x36xf32, #tpu.memory_space<vmem>>, vector<1x36xf32>
    %166 = vector.shape_cast %165 : vector<1x36xf32> to vector<1x36xf32>
    %167 = vector.broadcast %166 : vector<1x36xf32> to vector<12x36xf32>
    %c0_181 = arith.constant 0 : index
    %c0_182 = arith.constant 0 : index
    %c0_183 = arith.constant 0 : index
    %168 = vector.load %arg5[%c0_181, %c0_182, %c0_183] : memref<15x16x36xf32, #tpu.memory_space<vmem>>, vector<1x12x36xf32>
    %169 = vector.shape_cast %168 : vector<1x12x36xf32> to vector<12x36xf32>
    %c0_184 = arith.constant 0 : index
    %c0_185 = arith.constant 0 : index
    %170 = vector.load %arg2[%c0_184, %c0_185] : memref<75x36xf32, #tpu.memory_space<vmem>>, vector<1x36xf32>
    %171 = vector.broadcast %170 : vector<1x36xf32> to vector<12x36xf32>
    %172 = arith.mulf %171, %169 : vector<12x36xf32>
    %173 = arith.addf %167, %172 : vector<12x36xf32>
    %c0_186 = arith.constant 0 : index
    %c1_187 = arith.constant 1 : index
    %c0_188 = arith.constant 0 : index
    %174 = vector.load %arg5[%c0_186, %c1_187, %c0_188] : memref<15x16x36xf32, #tpu.memory_space<vmem>>, vector<1x12x36xf32>
    %175 = vector.shape_cast %174 : vector<1x12x36xf32> to vector<12x36xf32>
    %c5_189 = arith.constant 5 : index
    %c0_190 = arith.constant 0 : index
    %176 = vector.load %arg2[%c5_189, %c0_190] : memref<75x36xf32, #tpu.memory_space<vmem>>, vector<1x36xf32>
    %177 = vector.broadcast %176 : vector<1x36xf32> to vector<12x36xf32>
    %178 = arith.mulf %177, %175 : vector<12x36xf32>
    %179 = arith.addf %173, %178 : vector<12x36xf32>
    %c0_191 = arith.constant 0 : index
    %c2_192 = arith.constant 2 : index
    %c0_193 = arith.constant 0 : index
    %180 = vector.load %arg5[%c0_191, %c2_192, %c0_193] : memref<15x16x36xf32, #tpu.memory_space<vmem>>, vector<1x12x36xf32>
    %181 = vector.shape_cast %180 : vector<1x12x36xf32> to vector<12x36xf32>
    %c10_194 = arith.constant 10 : index
    %c0_195 = arith.constant 0 : index
    %182 = vector.load %arg2[%c10_194, %c0_195] : memref<75x36xf32, #tpu.memory_space<vmem>>, vector<1x36xf32>
    %183 = vector.broadcast %182 : vector<1x36xf32> to vector<12x36xf32>
    %184 = arith.mulf %183, %181 : vector<12x36xf32>
    %185 = arith.addf %179, %184 : vector<12x36xf32>
    %c0_196 = arith.constant 0 : index
    %c3_197 = arith.constant 3 : index
    %c0_198 = arith.constant 0 : index
    %186 = vector.load %arg5[%c0_196, %c3_197, %c0_198] : memref<15x16x36xf32, #tpu.memory_space<vmem>>, vector<1x12x36xf32>
    %187 = vector.shape_cast %186 : vector<1x12x36xf32> to vector<12x36xf32>
    %c15 = arith.constant 15 : index
    %c0_199 = arith.constant 0 : index
    %188 = vector.load %arg2[%c15, %c0_199] : memref<75x36xf32, #tpu.memory_space<vmem>>, vector<1x36xf32>
    %189 = vector.broadcast %188 : vector<1x36xf32> to vector<12x36xf32>
    %190 = arith.mulf %189, %187 : vector<12x36xf32>
    %191 = arith.addf %185, %190 : vector<12x36xf32>
    %c0_200 = arith.constant 0 : index
    %c4_201 = arith.constant 4 : index
    %c0_202 = arith.constant 0 : index
    %192 = vector.load %arg5[%c0_200, %c4_201, %c0_202] : memref<15x16x36xf32, #tpu.memory_space<vmem>>, vector<1x12x36xf32>
    %193 = vector.shape_cast %192 : vector<1x12x36xf32> to vector<12x36xf32>
    %c20 = arith.constant 20 : index
    %c0_203 = arith.constant 0 : index
    %194 = vector.load %arg2[%c20, %c0_203] : memref<75x36xf32, #tpu.memory_space<vmem>>, vector<1x36xf32>
    %195 = vector.broadcast %194 : vector<1x36xf32> to vector<12x36xf32>
    %196 = arith.mulf %195, %193 : vector<12x36xf32>
    %197 = arith.addf %191, %196 : vector<12x36xf32>
    %c1_204 = arith.constant 1 : index
    %c0_205 = arith.constant 0 : index
    %c0_206 = arith.constant 0 : index
    %198 = vector.load %arg5[%c1_204, %c0_205, %c0_206] : memref<15x16x36xf32, #tpu.memory_space<vmem>>, vector<1x12x36xf32>
    %199 = vector.shape_cast %198 : vector<1x12x36xf32> to vector<12x36xf32>
    %c1_207 = arith.constant 1 : index
    %c0_208 = arith.constant 0 : index
    %200 = vector.load %arg2[%c1_207, %c0_208] : memref<75x36xf32, #tpu.memory_space<vmem>>, vector<1x36xf32>
    %201 = vector.broadcast %200 : vector<1x36xf32> to vector<12x36xf32>
    %202 = arith.mulf %201, %199 : vector<12x36xf32>
    %203 = arith.addf %197, %202 : vector<12x36xf32>
    %c1_209 = arith.constant 1 : index
    %c1_210 = arith.constant 1 : index
    %c0_211 = arith.constant 0 : index
    %204 = vector.load %arg5[%c1_209, %c1_210, %c0_211] : memref<15x16x36xf32, #tpu.memory_space<vmem>>, vector<1x12x36xf32>
    %205 = vector.shape_cast %204 : vector<1x12x36xf32> to vector<12x36xf32>
    %c6_212 = arith.constant 6 : index
    %c0_213 = arith.constant 0 : index
    %206 = vector.load %arg2[%c6_212, %c0_213] : memref<75x36xf32, #tpu.memory_space<vmem>>, vector<1x36xf32>
    %207 = vector.broadcast %206 : vector<1x36xf32> to vector<12x36xf32>
    %208 = arith.mulf %207, %205 : vector<12x36xf32>
    %209 = arith.addf %203, %208 : vector<12x36xf32>
    %c1_214 = arith.constant 1 : index
    %c2_215 = arith.constant 2 : index
    %c0_216 = arith.constant 0 : index
    %210 = vector.load %arg5[%c1_214, %c2_215, %c0_216] : memref<15x16x36xf32, #tpu.memory_space<vmem>>, vector<1x12x36xf32>
    %211 = vector.shape_cast %210 : vector<1x12x36xf32> to vector<12x36xf32>
    %c11_217 = arith.constant 11 : index
    %c0_218 = arith.constant 0 : index
    %212 = vector.load %arg2[%c11_217, %c0_218] : memref<75x36xf32, #tpu.memory_space<vmem>>, vector<1x36xf32>
    %213 = vector.broadcast %212 : vector<1x36xf32> to vector<12x36xf32>
    %214 = arith.mulf %213, %211 : vector<12x36xf32>
    %215 = arith.addf %209, %214 : vector<12x36xf32>
    %c1_219 = arith.constant 1 : index
    %c3_220 = arith.constant 3 : index
    %c0_221 = arith.constant 0 : index
    %216 = vector.load %arg5[%c1_219, %c3_220, %c0_221] : memref<15x16x36xf32, #tpu.memory_space<vmem>>, vector<1x12x36xf32>
    %217 = vector.shape_cast %216 : vector<1x12x36xf32> to vector<12x36xf32>
    %c16 = arith.constant 16 : index
    %c0_222 = arith.constant 0 : index
    %218 = vector.load %arg2[%c16, %c0_222] : memref<75x36xf32, #tpu.memory_space<vmem>>, vector<1x36xf32>
    %219 = vector.broadcast %218 : vector<1x36xf32> to vector<12x36xf32>
    %220 = arith.mulf %219, %217 : vector<12x36xf32>
    %221 = arith.addf %215, %220 : vector<12x36xf32>
    %c1_223 = arith.constant 1 : index
    %c4_224 = arith.constant 4 : index
    %c0_225 = arith.constant 0 : index
    %222 = vector.load %arg5[%c1_223, %c4_224, %c0_225] : memref<15x16x36xf32, #tpu.memory_space<vmem>>, vector<1x12x36xf32>
    %223 = vector.shape_cast %222 : vector<1x12x36xf32> to vector<12x36xf32>
    %c21 = arith.constant 21 : index
    %c0_226 = arith.constant 0 : index
    %224 = vector.load %arg2[%c21, %c0_226] : memref<75x36xf32, #tpu.memory_space<vmem>>, vector<1x36xf32>
    %225 = vector.broadcast %224 : vector<1x36xf32> to vector<12x36xf32>
    %226 = arith.mulf %225, %223 : vector<12x36xf32>
    %227 = arith.addf %221, %226 : vector<12x36xf32>
    %c2_227 = arith.constant 2 : index
    %c0_228 = arith.constant 0 : index
    %c0_229 = arith.constant 0 : index
    %228 = vector.load %arg5[%c2_227, %c0_228, %c0_229] : memref<15x16x36xf32, #tpu.memory_space<vmem>>, vector<1x12x36xf32>
    %229 = vector.shape_cast %228 : vector<1x12x36xf32> to vector<12x36xf32>
    %c2_230 = arith.constant 2 : index
    %c0_231 = arith.constant 0 : index
    %230 = vector.load %arg2[%c2_230, %c0_231] : memref<75x36xf32, #tpu.memory_space<vmem>>, vector<1x36xf32>
    %231 = vector.broadcast %230 : vector<1x36xf32> to vector<12x36xf32>
    %232 = arith.mulf %231, %229 : vector<12x36xf32>
    %233 = arith.addf %227, %232 : vector<12x36xf32>
    %c2_232 = arith.constant 2 : index
    %c1_233 = arith.constant 1 : index
    %c0_234 = arith.constant 0 : index
    %234 = vector.load %arg5[%c2_232, %c1_233, %c0_234] : memref<15x16x36xf32, #tpu.memory_space<vmem>>, vector<1x12x36xf32>
    %235 = vector.shape_cast %234 : vector<1x12x36xf32> to vector<12x36xf32>
    %c7_235 = arith.constant 7 : index
    %c0_236 = arith.constant 0 : index
    %236 = vector.load %arg2[%c7_235, %c0_236] : memref<75x36xf32, #tpu.memory_space<vmem>>, vector<1x36xf32>
    %237 = vector.broadcast %236 : vector<1x36xf32> to vector<12x36xf32>
    %238 = arith.mulf %237, %235 : vector<12x36xf32>
    %239 = arith.addf %233, %238 : vector<12x36xf32>
    %c2_237 = arith.constant 2 : index
    %c2_238 = arith.constant 2 : index
    %c0_239 = arith.constant 0 : index
    %240 = vector.load %arg5[%c2_237, %c2_238, %c0_239] : memref<15x16x36xf32, #tpu.memory_space<vmem>>, vector<1x12x36xf32>
    %241 = vector.shape_cast %240 : vector<1x12x36xf32> to vector<12x36xf32>
    %c12_240 = arith.constant 12 : index
    %c0_241 = arith.constant 0 : index
    %242 = vector.load %arg2[%c12_240, %c0_241] : memref<75x36xf32, #tpu.memory_space<vmem>>, vector<1x36xf32>
    %243 = vector.broadcast %242 : vector<1x36xf32> to vector<12x36xf32>
    %244 = arith.mulf %243, %241 : vector<12x36xf32>
    %245 = arith.addf %239, %244 : vector<12x36xf32>
    %c2_242 = arith.constant 2 : index
    %c3_243 = arith.constant 3 : index
    %c0_244 = arith.constant 0 : index
    %246 = vector.load %arg5[%c2_242, %c3_243, %c0_244] : memref<15x16x36xf32, #tpu.memory_space<vmem>>, vector<1x12x36xf32>
    %247 = vector.shape_cast %246 : vector<1x12x36xf32> to vector<12x36xf32>
    %c17 = arith.constant 17 : index
    %c0_245 = arith.constant 0 : index
    %248 = vector.load %arg2[%c17, %c0_245] : memref<75x36xf32, #tpu.memory_space<vmem>>, vector<1x36xf32>
    %249 = vector.broadcast %248 : vector<1x36xf32> to vector<12x36xf32>
    %250 = arith.mulf %249, %247 : vector<12x36xf32>
    %251 = arith.addf %245, %250 : vector<12x36xf32>
    %c2_246 = arith.constant 2 : index
    %c4_247 = arith.constant 4 : index
    %c0_248 = arith.constant 0 : index
    %252 = vector.load %arg5[%c2_246, %c4_247, %c0_248] : memref<15x16x36xf32, #tpu.memory_space<vmem>>, vector<1x12x36xf32>
    %253 = vector.shape_cast %252 : vector<1x12x36xf32> to vector<12x36xf32>
    %c22 = arith.constant 22 : index
    %c0_249 = arith.constant 0 : index
    %254 = vector.load %arg2[%c22, %c0_249] : memref<75x36xf32, #tpu.memory_space<vmem>>, vector<1x36xf32>
    %255 = vector.broadcast %254 : vector<1x36xf32> to vector<12x36xf32>
    %256 = arith.mulf %255, %253 : vector<12x36xf32>
    %257 = arith.addf %251, %256 : vector<12x36xf32>
    %c3_250 = arith.constant 3 : index
    %c0_251 = arith.constant 0 : index
    %c0_252 = arith.constant 0 : index
    %258 = vector.load %arg5[%c3_250, %c0_251, %c0_252] : memref<15x16x36xf32, #tpu.memory_space<vmem>>, vector<1x12x36xf32>
    %259 = vector.shape_cast %258 : vector<1x12x36xf32> to vector<12x36xf32>
    %c3_253 = arith.constant 3 : index
    %c0_254 = arith.constant 0 : index
    %260 = vector.load %arg2[%c3_253, %c0_254] : memref<75x36xf32, #tpu.memory_space<vmem>>, vector<1x36xf32>
    %261 = vector.broadcast %260 : vector<1x36xf32> to vector<12x36xf32>
    %262 = arith.mulf %261, %259 : vector<12x36xf32>
    %263 = arith.addf %257, %262 : vector<12x36xf32>
    %c3_255 = arith.constant 3 : index
    %c1_256 = arith.constant 1 : index
    %c0_257 = arith.constant 0 : index
    %264 = vector.load %arg5[%c3_255, %c1_256, %c0_257] : memref<15x16x36xf32, #tpu.memory_space<vmem>>, vector<1x12x36xf32>
    %265 = vector.shape_cast %264 : vector<1x12x36xf32> to vector<12x36xf32>
    %c8_258 = arith.constant 8 : index
    %c0_259 = arith.constant 0 : index
    %266 = vector.load %arg2[%c8_258, %c0_259] : memref<75x36xf32, #tpu.memory_space<vmem>>, vector<1x36xf32>
    %267 = vector.broadcast %266 : vector<1x36xf32> to vector<12x36xf32>
    %268 = arith.mulf %267, %265 : vector<12x36xf32>
    %269 = arith.addf %263, %268 : vector<12x36xf32>
    %c3_260 = arith.constant 3 : index
    %c2_261 = arith.constant 2 : index
    %c0_262 = arith.constant 0 : index
    %270 = vector.load %arg5[%c3_260, %c2_261, %c0_262] : memref<15x16x36xf32, #tpu.memory_space<vmem>>, vector<1x12x36xf32>
    %271 = vector.shape_cast %270 : vector<1x12x36xf32> to vector<12x36xf32>
    %c13_263 = arith.constant 13 : index
    %c0_264 = arith.constant 0 : index
    %272 = vector.load %arg2[%c13_263, %c0_264] : memref<75x36xf32, #tpu.memory_space<vmem>>, vector<1x36xf32>
    %273 = vector.broadcast %272 : vector<1x36xf32> to vector<12x36xf32>
    %274 = arith.mulf %273, %271 : vector<12x36xf32>
    %275 = arith.addf %269, %274 : vector<12x36xf32>
    %c3_265 = arith.constant 3 : index
    %c3_266 = arith.constant 3 : index
    %c0_267 = arith.constant 0 : index
    %276 = vector.load %arg5[%c3_265, %c3_266, %c0_267] : memref<15x16x36xf32, #tpu.memory_space<vmem>>, vector<1x12x36xf32>
    %277 = vector.shape_cast %276 : vector<1x12x36xf32> to vector<12x36xf32>
    %c18 = arith.constant 18 : index
    %c0_268 = arith.constant 0 : index
    %278 = vector.load %arg2[%c18, %c0_268] : memref<75x36xf32, #tpu.memory_space<vmem>>, vector<1x36xf32>
    %279 = vector.broadcast %278 : vector<1x36xf32> to vector<12x36xf32>
    %280 = arith.mulf %279, %277 : vector<12x36xf32>
    %281 = arith.addf %275, %280 : vector<12x36xf32>
    %c3_269 = arith.constant 3 : index
    %c4_270 = arith.constant 4 : index
    %c0_271 = arith.constant 0 : index
    %282 = vector.load %arg5[%c3_269, %c4_270, %c0_271] : memref<15x16x36xf32, #tpu.memory_space<vmem>>, vector<1x12x36xf32>
    %283 = vector.shape_cast %282 : vector<1x12x36xf32> to vector<12x36xf32>
    %c23 = arith.constant 23 : index
    %c0_272 = arith.constant 0 : index
    %284 = vector.load %arg2[%c23, %c0_272] : memref<75x36xf32, #tpu.memory_space<vmem>>, vector<1x36xf32>
    %285 = vector.broadcast %284 : vector<1x36xf32> to vector<12x36xf32>
    %286 = arith.mulf %285, %283 : vector<12x36xf32>
    %287 = arith.addf %281, %286 : vector<12x36xf32>
    %c4_273 = arith.constant 4 : index
    %c0_274 = arith.constant 0 : index
    %c0_275 = arith.constant 0 : index
    %288 = vector.load %arg5[%c4_273, %c0_274, %c0_275] : memref<15x16x36xf32, #tpu.memory_space<vmem>>, vector<1x12x36xf32>
    %289 = vector.shape_cast %288 : vector<1x12x36xf32> to vector<12x36xf32>
    %c4_276 = arith.constant 4 : index
    %c0_277 = arith.constant 0 : index
    %290 = vector.load %arg2[%c4_276, %c0_277] : memref<75x36xf32, #tpu.memory_space<vmem>>, vector<1x36xf32>
    %291 = vector.broadcast %290 : vector<1x36xf32> to vector<12x36xf32>
    %292 = arith.mulf %291, %289 : vector<12x36xf32>
    %293 = arith.addf %287, %292 : vector<12x36xf32>
    %c4_278 = arith.constant 4 : index
    %c1_279 = arith.constant 1 : index
    %c0_280 = arith.constant 0 : index
    %294 = vector.load %arg5[%c4_278, %c1_279, %c0_280] : memref<15x16x36xf32, #tpu.memory_space<vmem>>, vector<1x12x36xf32>
    %295 = vector.shape_cast %294 : vector<1x12x36xf32> to vector<12x36xf32>
    %c9_281 = arith.constant 9 : index
    %c0_282 = arith.constant 0 : index
    %296 = vector.load %arg2[%c9_281, %c0_282] : memref<75x36xf32, #tpu.memory_space<vmem>>, vector<1x36xf32>
    %297 = vector.broadcast %296 : vector<1x36xf32> to vector<12x36xf32>
    %298 = arith.mulf %297, %295 : vector<12x36xf32>
    %299 = arith.addf %293, %298 : vector<12x36xf32>
    %c4_283 = arith.constant 4 : index
    %c2_284 = arith.constant 2 : index
    %c0_285 = arith.constant 0 : index
    %300 = vector.load %arg5[%c4_283, %c2_284, %c0_285] : memref<15x16x36xf32, #tpu.memory_space<vmem>>, vector<1x12x36xf32>
    %301 = vector.shape_cast %300 : vector<1x12x36xf32> to vector<12x36xf32>
    %c14_286 = arith.constant 14 : index
    %c0_287 = arith.constant 0 : index
    %302 = vector.load %arg2[%c14_286, %c0_287] : memref<75x36xf32, #tpu.memory_space<vmem>>, vector<1x36xf32>
    %303 = vector.broadcast %302 : vector<1x36xf32> to vector<12x36xf32>
    %304 = arith.mulf %303, %301 : vector<12x36xf32>
    %305 = arith.addf %299, %304 : vector<12x36xf32>
    %c4_288 = arith.constant 4 : index
    %c3_289 = arith.constant 3 : index
    %c0_290 = arith.constant 0 : index
    %306 = vector.load %arg5[%c4_288, %c3_289, %c0_290] : memref<15x16x36xf32, #tpu.memory_space<vmem>>, vector<1x12x36xf32>
    %307 = vector.shape_cast %306 : vector<1x12x36xf32> to vector<12x36xf32>
    %c19 = arith.constant 19 : index
    %c0_291 = arith.constant 0 : index
    %308 = vector.load %arg2[%c19, %c0_291] : memref<75x36xf32, #tpu.memory_space<vmem>>, vector<1x36xf32>
    %309 = vector.broadcast %308 : vector<1x36xf32> to vector<12x36xf32>
    %310 = arith.mulf %309, %307 : vector<12x36xf32>
    %311 = arith.addf %305, %310 : vector<12x36xf32>
    %c4_292 = arith.constant 4 : index
    %c4_293 = arith.constant 4 : index
    %c0_294 = arith.constant 0 : index
    %312 = vector.load %arg5[%c4_292, %c4_293, %c0_294] : memref<15x16x36xf32, #tpu.memory_space<vmem>>, vector<1x12x36xf32>
    %313 = vector.shape_cast %312 : vector<1x12x36xf32> to vector<12x36xf32>
    %c24_295 = arith.constant 24 : index
    %c0_296 = arith.constant 0 : index
    %314 = vector.load %arg2[%c24_295, %c0_296] : memref<75x36xf32, #tpu.memory_space<vmem>>, vector<1x36xf32>
    %315 = vector.broadcast %314 : vector<1x36xf32> to vector<12x36xf32>
    %316 = arith.mulf %315, %313 : vector<12x36xf32>
    %317 = arith.addf %311, %316 : vector<12x36xf32>
    %c5_297 = arith.constant 5 : index
    %c0_298 = arith.constant 0 : index
    %c0_299 = arith.constant 0 : index
    %318 = vector.load %arg5[%c5_297, %c0_298, %c0_299] : memref<15x16x36xf32, #tpu.memory_space<vmem>>, vector<1x12x36xf32>
    %319 = vector.shape_cast %318 : vector<1x12x36xf32> to vector<12x36xf32>
    %c25 = arith.constant 25 : index
    %c0_300 = arith.constant 0 : index
    %320 = vector.load %arg2[%c25, %c0_300] : memref<75x36xf32, #tpu.memory_space<vmem>>, vector<1x36xf32>
    %321 = vector.broadcast %320 : vector<1x36xf32> to vector<12x36xf32>
    %322 = arith.mulf %321, %319 : vector<12x36xf32>
    %323 = arith.addf %317, %322 : vector<12x36xf32>
    %c5_301 = arith.constant 5 : index
    %c1_302 = arith.constant 1 : index
    %c0_303 = arith.constant 0 : index
    %324 = vector.load %arg5[%c5_301, %c1_302, %c0_303] : memref<15x16x36xf32, #tpu.memory_space<vmem>>, vector<1x12x36xf32>
    %325 = vector.shape_cast %324 : vector<1x12x36xf32> to vector<12x36xf32>
    %c30 = arith.constant 30 : index
    %c0_304 = arith.constant 0 : index
    %326 = vector.load %arg2[%c30, %c0_304] : memref<75x36xf32, #tpu.memory_space<vmem>>, vector<1x36xf32>
    %327 = vector.broadcast %326 : vector<1x36xf32> to vector<12x36xf32>
    %328 = arith.mulf %327, %325 : vector<12x36xf32>
    %329 = arith.addf %323, %328 : vector<12x36xf32>
    %c5_305 = arith.constant 5 : index
    %c2_306 = arith.constant 2 : index
    %c0_307 = arith.constant 0 : index
    %330 = vector.load %arg5[%c5_305, %c2_306, %c0_307] : memref<15x16x36xf32, #tpu.memory_space<vmem>>, vector<1x12x36xf32>
    %331 = vector.shape_cast %330 : vector<1x12x36xf32> to vector<12x36xf32>
    %c35 = arith.constant 35 : index
    %c0_308 = arith.constant 0 : index
    %332 = vector.load %arg2[%c35, %c0_308] : memref<75x36xf32, #tpu.memory_space<vmem>>, vector<1x36xf32>
    %333 = vector.broadcast %332 : vector<1x36xf32> to vector<12x36xf32>
    %334 = arith.mulf %333, %331 : vector<12x36xf32>
    %335 = arith.addf %329, %334 : vector<12x36xf32>
    %c5_309 = arith.constant 5 : index
    %c3_310 = arith.constant 3 : index
    %c0_311 = arith.constant 0 : index
    %336 = vector.load %arg5[%c5_309, %c3_310, %c0_311] : memref<15x16x36xf32, #tpu.memory_space<vmem>>, vector<1x12x36xf32>
    %337 = vector.shape_cast %336 : vector<1x12x36xf32> to vector<12x36xf32>
    %c40 = arith.constant 40 : index
    %c0_312 = arith.constant 0 : index
    %338 = vector.load %arg2[%c40, %c0_312] : memref<75x36xf32, #tpu.memory_space<vmem>>, vector<1x36xf32>
    %339 = vector.broadcast %338 : vector<1x36xf32> to vector<12x36xf32>
    %340 = arith.mulf %339, %337 : vector<12x36xf32>
    %341 = arith.addf %335, %340 : vector<12x36xf32>
    %c5_313 = arith.constant 5 : index
    %c4_314 = arith.constant 4 : index
    %c0_315 = arith.constant 0 : index
    %342 = vector.load %arg5[%c5_313, %c4_314, %c0_315] : memref<15x16x36xf32, #tpu.memory_space<vmem>>, vector<1x12x36xf32>
    %343 = vector.shape_cast %342 : vector<1x12x36xf32> to vector<12x36xf32>
    %c45 = arith.constant 45 : index
    %c0_316 = arith.constant 0 : index
    %344 = vector.load %arg2[%c45, %c0_316] : memref<75x36xf32, #tpu.memory_space<vmem>>, vector<1x36xf32>
    %345 = vector.broadcast %344 : vector<1x36xf32> to vector<12x36xf32>
    %346 = arith.mulf %345, %343 : vector<12x36xf32>
    %347 = arith.addf %341, %346 : vector<12x36xf32>
    %c6_317 = arith.constant 6 : index
    %c0_318 = arith.constant 0 : index
    %c0_319 = arith.constant 0 : index
    %348 = vector.load %arg5[%c6_317, %c0_318, %c0_319] : memref<15x16x36xf32, #tpu.memory_space<vmem>>, vector<1x12x36xf32>
    %349 = vector.shape_cast %348 : vector<1x12x36xf32> to vector<12x36xf32>
    %c26 = arith.constant 26 : index
    %c0_320 = arith.constant 0 : index
    %350 = vector.load %arg2[%c26, %c0_320] : memref<75x36xf32, #tpu.memory_space<vmem>>, vector<1x36xf32>
    %351 = vector.broadcast %350 : vector<1x36xf32> to vector<12x36xf32>
    %352 = arith.mulf %351, %349 : vector<12x36xf32>
    %353 = arith.addf %347, %352 : vector<12x36xf32>
    %c6_321 = arith.constant 6 : index
    %c1_322 = arith.constant 1 : index
    %c0_323 = arith.constant 0 : index
    %354 = vector.load %arg5[%c6_321, %c1_322, %c0_323] : memref<15x16x36xf32, #tpu.memory_space<vmem>>, vector<1x12x36xf32>
    %355 = vector.shape_cast %354 : vector<1x12x36xf32> to vector<12x36xf32>
    %c31 = arith.constant 31 : index
    %c0_324 = arith.constant 0 : index
    %356 = vector.load %arg2[%c31, %c0_324] : memref<75x36xf32, #tpu.memory_space<vmem>>, vector<1x36xf32>
    %357 = vector.broadcast %356 : vector<1x36xf32> to vector<12x36xf32>
    %358 = arith.mulf %357, %355 : vector<12x36xf32>
    %359 = arith.addf %353, %358 : vector<12x36xf32>
    %c6_325 = arith.constant 6 : index
    %c2_326 = arith.constant 2 : index
    %c0_327 = arith.constant 0 : index
    %360 = vector.load %arg5[%c6_325, %c2_326, %c0_327] : memref<15x16x36xf32, #tpu.memory_space<vmem>>, vector<1x12x36xf32>
    %361 = vector.shape_cast %360 : vector<1x12x36xf32> to vector<12x36xf32>
    %c36 = arith.constant 36 : index
    %c0_328 = arith.constant 0 : index
    %362 = vector.load %arg2[%c36, %c0_328] : memref<75x36xf32, #tpu.memory_space<vmem>>, vector<1x36xf32>
    %363 = vector.broadcast %362 : vector<1x36xf32> to vector<12x36xf32>
    %364 = arith.mulf %363, %361 : vector<12x36xf32>
    %365 = arith.addf %359, %364 : vector<12x36xf32>
    %c6_329 = arith.constant 6 : index
    %c3_330 = arith.constant 3 : index
    %c0_331 = arith.constant 0 : index
    %366 = vector.load %arg5[%c6_329, %c3_330, %c0_331] : memref<15x16x36xf32, #tpu.memory_space<vmem>>, vector<1x12x36xf32>
    %367 = vector.shape_cast %366 : vector<1x12x36xf32> to vector<12x36xf32>
    %c41 = arith.constant 41 : index
    %c0_332 = arith.constant 0 : index
    %368 = vector.load %arg2[%c41, %c0_332] : memref<75x36xf32, #tpu.memory_space<vmem>>, vector<1x36xf32>
    %369 = vector.broadcast %368 : vector<1x36xf32> to vector<12x36xf32>
    %370 = arith.mulf %369, %367 : vector<12x36xf32>
    %371 = arith.addf %365, %370 : vector<12x36xf32>
    %c6_333 = arith.constant 6 : index
    %c4_334 = arith.constant 4 : index
    %c0_335 = arith.constant 0 : index
    %372 = vector.load %arg5[%c6_333, %c4_334, %c0_335] : memref<15x16x36xf32, #tpu.memory_space<vmem>>, vector<1x12x36xf32>
    %373 = vector.shape_cast %372 : vector<1x12x36xf32> to vector<12x36xf32>
    %c46 = arith.constant 46 : index
    %c0_336 = arith.constant 0 : index
    %374 = vector.load %arg2[%c46, %c0_336] : memref<75x36xf32, #tpu.memory_space<vmem>>, vector<1x36xf32>
    %375 = vector.broadcast %374 : vector<1x36xf32> to vector<12x36xf32>
    %376 = arith.mulf %375, %373 : vector<12x36xf32>
    %377 = arith.addf %371, %376 : vector<12x36xf32>
    %c7_337 = arith.constant 7 : index
    %c0_338 = arith.constant 0 : index
    %c0_339 = arith.constant 0 : index
    %378 = vector.load %arg5[%c7_337, %c0_338, %c0_339] : memref<15x16x36xf32, #tpu.memory_space<vmem>>, vector<1x12x36xf32>
    %379 = vector.shape_cast %378 : vector<1x12x36xf32> to vector<12x36xf32>
    %c27 = arith.constant 27 : index
    %c0_340 = arith.constant 0 : index
    %380 = vector.load %arg2[%c27, %c0_340] : memref<75x36xf32, #tpu.memory_space<vmem>>, vector<1x36xf32>
    %381 = vector.broadcast %380 : vector<1x36xf32> to vector<12x36xf32>
    %382 = arith.mulf %381, %379 : vector<12x36xf32>
    %383 = arith.addf %377, %382 : vector<12x36xf32>
    %c7_341 = arith.constant 7 : index
    %c1_342 = arith.constant 1 : index
    %c0_343 = arith.constant 0 : index
    %384 = vector.load %arg5[%c7_341, %c1_342, %c0_343] : memref<15x16x36xf32, #tpu.memory_space<vmem>>, vector<1x12x36xf32>
    %385 = vector.shape_cast %384 : vector<1x12x36xf32> to vector<12x36xf32>
    %c32 = arith.constant 32 : index
    %c0_344 = arith.constant 0 : index
    %386 = vector.load %arg2[%c32, %c0_344] : memref<75x36xf32, #tpu.memory_space<vmem>>, vector<1x36xf32>
    %387 = vector.broadcast %386 : vector<1x36xf32> to vector<12x36xf32>
    %388 = arith.mulf %387, %385 : vector<12x36xf32>
    %389 = arith.addf %383, %388 : vector<12x36xf32>
    %c7_345 = arith.constant 7 : index
    %c2_346 = arith.constant 2 : index
    %c0_347 = arith.constant 0 : index
    %390 = vector.load %arg5[%c7_345, %c2_346, %c0_347] : memref<15x16x36xf32, #tpu.memory_space<vmem>>, vector<1x12x36xf32>
    %391 = vector.shape_cast %390 : vector<1x12x36xf32> to vector<12x36xf32>
    %c37 = arith.constant 37 : index
    %c0_348 = arith.constant 0 : index
    %392 = vector.load %arg2[%c37, %c0_348] : memref<75x36xf32, #tpu.memory_space<vmem>>, vector<1x36xf32>
    %393 = vector.broadcast %392 : vector<1x36xf32> to vector<12x36xf32>
    %394 = arith.mulf %393, %391 : vector<12x36xf32>
    %395 = arith.addf %389, %394 : vector<12x36xf32>
    %c7_349 = arith.constant 7 : index
    %c3_350 = arith.constant 3 : index
    %c0_351 = arith.constant 0 : index
    %396 = vector.load %arg5[%c7_349, %c3_350, %c0_351] : memref<15x16x36xf32, #tpu.memory_space<vmem>>, vector<1x12x36xf32>
    %397 = vector.shape_cast %396 : vector<1x12x36xf32> to vector<12x36xf32>
    %c42 = arith.constant 42 : index
    %c0_352 = arith.constant 0 : index
    %398 = vector.load %arg2[%c42, %c0_352] : memref<75x36xf32, #tpu.memory_space<vmem>>, vector<1x36xf32>
    %399 = vector.broadcast %398 : vector<1x36xf32> to vector<12x36xf32>
    %400 = arith.mulf %399, %397 : vector<12x36xf32>
    %401 = arith.addf %395, %400 : vector<12x36xf32>
    %c7_353 = arith.constant 7 : index
    %c4_354 = arith.constant 4 : index
    %c0_355 = arith.constant 0 : index
    %402 = vector.load %arg5[%c7_353, %c4_354, %c0_355] : memref<15x16x36xf32, #tpu.memory_space<vmem>>, vector<1x12x36xf32>
    %403 = vector.shape_cast %402 : vector<1x12x36xf32> to vector<12x36xf32>
    %c47 = arith.constant 47 : index
    %c0_356 = arith.constant 0 : index
    %404 = vector.load %arg2[%c47, %c0_356] : memref<75x36xf32, #tpu.memory_space<vmem>>, vector<1x36xf32>
    %405 = vector.broadcast %404 : vector<1x36xf32> to vector<12x36xf32>
    %406 = arith.mulf %405, %403 : vector<12x36xf32>
    %407 = arith.addf %401, %406 : vector<12x36xf32>
    %c8_357 = arith.constant 8 : index
    %c0_358 = arith.constant 0 : index
    %c0_359 = arith.constant 0 : index
    %408 = vector.load %arg5[%c8_357, %c0_358, %c0_359] : memref<15x16x36xf32, #tpu.memory_space<vmem>>, vector<1x12x36xf32>
    %409 = vector.shape_cast %408 : vector<1x12x36xf32> to vector<12x36xf32>
    %c28 = arith.constant 28 : index
    %c0_360 = arith.constant 0 : index
    %410 = vector.load %arg2[%c28, %c0_360] : memref<75x36xf32, #tpu.memory_space<vmem>>, vector<1x36xf32>
    %411 = vector.broadcast %410 : vector<1x36xf32> to vector<12x36xf32>
    %412 = arith.mulf %411, %409 : vector<12x36xf32>
    %413 = arith.addf %407, %412 : vector<12x36xf32>
    %c8_361 = arith.constant 8 : index
    %c1_362 = arith.constant 1 : index
    %c0_363 = arith.constant 0 : index
    %414 = vector.load %arg5[%c8_361, %c1_362, %c0_363] : memref<15x16x36xf32, #tpu.memory_space<vmem>>, vector<1x12x36xf32>
    %415 = vector.shape_cast %414 : vector<1x12x36xf32> to vector<12x36xf32>
    %c33 = arith.constant 33 : index
    %c0_364 = arith.constant 0 : index
    %416 = vector.load %arg2[%c33, %c0_364] : memref<75x36xf32, #tpu.memory_space<vmem>>, vector<1x36xf32>
    %417 = vector.broadcast %416 : vector<1x36xf32> to vector<12x36xf32>
    %418 = arith.mulf %417, %415 : vector<12x36xf32>
    %419 = arith.addf %413, %418 : vector<12x36xf32>
    %c8_365 = arith.constant 8 : index
    %c2_366 = arith.constant 2 : index
    %c0_367 = arith.constant 0 : index
    %420 = vector.load %arg5[%c8_365, %c2_366, %c0_367] : memref<15x16x36xf32, #tpu.memory_space<vmem>>, vector<1x12x36xf32>
    %421 = vector.shape_cast %420 : vector<1x12x36xf32> to vector<12x36xf32>
    %c38 = arith.constant 38 : index
    %c0_368 = arith.constant 0 : index
    %422 = vector.load %arg2[%c38, %c0_368] : memref<75x36xf32, #tpu.memory_space<vmem>>, vector<1x36xf32>
    %423 = vector.broadcast %422 : vector<1x36xf32> to vector<12x36xf32>
    %424 = arith.mulf %423, %421 : vector<12x36xf32>
    %425 = arith.addf %419, %424 : vector<12x36xf32>
    %c8_369 = arith.constant 8 : index
    %c3_370 = arith.constant 3 : index
    %c0_371 = arith.constant 0 : index
    %426 = vector.load %arg5[%c8_369, %c3_370, %c0_371] : memref<15x16x36xf32, #tpu.memory_space<vmem>>, vector<1x12x36xf32>
    %427 = vector.shape_cast %426 : vector<1x12x36xf32> to vector<12x36xf32>
    %c43 = arith.constant 43 : index
    %c0_372 = arith.constant 0 : index
    %428 = vector.load %arg2[%c43, %c0_372] : memref<75x36xf32, #tpu.memory_space<vmem>>, vector<1x36xf32>
    %429 = vector.broadcast %428 : vector<1x36xf32> to vector<12x36xf32>
    %430 = arith.mulf %429, %427 : vector<12x36xf32>
    %431 = arith.addf %425, %430 : vector<12x36xf32>
    %c8_373 = arith.constant 8 : index
    %c4_374 = arith.constant 4 : index
    %c0_375 = arith.constant 0 : index
    %432 = vector.load %arg5[%c8_373, %c4_374, %c0_375] : memref<15x16x36xf32, #tpu.memory_space<vmem>>, vector<1x12x36xf32>
    %433 = vector.shape_cast %432 : vector<1x12x36xf32> to vector<12x36xf32>
    %c48 = arith.constant 48 : index
    %c0_376 = arith.constant 0 : index
    %434 = vector.load %arg2[%c48, %c0_376] : memref<75x36xf32, #tpu.memory_space<vmem>>, vector<1x36xf32>
    %435 = vector.broadcast %434 : vector<1x36xf32> to vector<12x36xf32>
    %436 = arith.mulf %435, %433 : vector<12x36xf32>
    %437 = arith.addf %431, %436 : vector<12x36xf32>
    %c9_377 = arith.constant 9 : index
    %c0_378 = arith.constant 0 : index
    %c0_379 = arith.constant 0 : index
    %438 = vector.load %arg5[%c9_377, %c0_378, %c0_379] : memref<15x16x36xf32, #tpu.memory_space<vmem>>, vector<1x12x36xf32>
    %439 = vector.shape_cast %438 : vector<1x12x36xf32> to vector<12x36xf32>
    %c29 = arith.constant 29 : index
    %c0_380 = arith.constant 0 : index
    %440 = vector.load %arg2[%c29, %c0_380] : memref<75x36xf32, #tpu.memory_space<vmem>>, vector<1x36xf32>
    %441 = vector.broadcast %440 : vector<1x36xf32> to vector<12x36xf32>
    %442 = arith.mulf %441, %439 : vector<12x36xf32>
    %443 = arith.addf %437, %442 : vector<12x36xf32>
    %c9_381 = arith.constant 9 : index
    %c1_382 = arith.constant 1 : index
    %c0_383 = arith.constant 0 : index
    %444 = vector.load %arg5[%c9_381, %c1_382, %c0_383] : memref<15x16x36xf32, #tpu.memory_space<vmem>>, vector<1x12x36xf32>
    %445 = vector.shape_cast %444 : vector<1x12x36xf32> to vector<12x36xf32>
    %c34 = arith.constant 34 : index
    %c0_384 = arith.constant 0 : index
    %446 = vector.load %arg2[%c34, %c0_384] : memref<75x36xf32, #tpu.memory_space<vmem>>, vector<1x36xf32>
    %447 = vector.broadcast %446 : vector<1x36xf32> to vector<12x36xf32>
    %448 = arith.mulf %447, %445 : vector<12x36xf32>
    %449 = arith.addf %443, %448 : vector<12x36xf32>
    %c9_385 = arith.constant 9 : index
    %c2_386 = arith.constant 2 : index
    %c0_387 = arith.constant 0 : index
    %450 = vector.load %arg5[%c9_385, %c2_386, %c0_387] : memref<15x16x36xf32, #tpu.memory_space<vmem>>, vector<1x12x36xf32>
    %451 = vector.shape_cast %450 : vector<1x12x36xf32> to vector<12x36xf32>
    %c39 = arith.constant 39 : index
    %c0_388 = arith.constant 0 : index
    %452 = vector.load %arg2[%c39, %c0_388] : memref<75x36xf32, #tpu.memory_space<vmem>>, vector<1x36xf32>
    %453 = vector.broadcast %452 : vector<1x36xf32> to vector<12x36xf32>
    %454 = arith.mulf %453, %451 : vector<12x36xf32>
    %455 = arith.addf %449, %454 : vector<12x36xf32>
    %c9_389 = arith.constant 9 : index
    %c3_390 = arith.constant 3 : index
    %c0_391 = arith.constant 0 : index
    %456 = vector.load %arg5[%c9_389, %c3_390, %c0_391] : memref<15x16x36xf32, #tpu.memory_space<vmem>>, vector<1x12x36xf32>
    %457 = vector.shape_cast %456 : vector<1x12x36xf32> to vector<12x36xf32>
    %c44 = arith.constant 44 : index
    %c0_392 = arith.constant 0 : index
    %458 = vector.load %arg2[%c44, %c0_392] : memref<75x36xf32, #tpu.memory_space<vmem>>, vector<1x36xf32>
    %459 = vector.broadcast %458 : vector<1x36xf32> to vector<12x36xf32>
    %460 = arith.mulf %459, %457 : vector<12x36xf32>
    %461 = arith.addf %455, %460 : vector<12x36xf32>
    %c9_393 = arith.constant 9 : index
    %c4_394 = arith.constant 4 : index
    %c0_395 = arith.constant 0 : index
    %462 = vector.load %arg5[%c9_393, %c4_394, %c0_395] : memref<15x16x36xf32, #tpu.memory_space<vmem>>, vector<1x12x36xf32>
    %463 = vector.shape_cast %462 : vector<1x12x36xf32> to vector<12x36xf32>
    %c49 = arith.constant 49 : index
    %c0_396 = arith.constant 0 : index
    %464 = vector.load %arg2[%c49, %c0_396] : memref<75x36xf32, #tpu.memory_space<vmem>>, vector<1x36xf32>
    %465 = vector.broadcast %464 : vector<1x36xf32> to vector<12x36xf32>
    %466 = arith.mulf %465, %463 : vector<12x36xf32>
    %467 = arith.addf %461, %466 : vector<12x36xf32>
    %c10_397 = arith.constant 10 : index
    %c0_398 = arith.constant 0 : index
    %c0_399 = arith.constant 0 : index
    %468 = vector.load %arg5[%c10_397, %c0_398, %c0_399] : memref<15x16x36xf32, #tpu.memory_space<vmem>>, vector<1x12x36xf32>
    %469 = vector.shape_cast %468 : vector<1x12x36xf32> to vector<12x36xf32>
    %c50 = arith.constant 50 : index
    %c0_400 = arith.constant 0 : index
    %470 = vector.load %arg2[%c50, %c0_400] : memref<75x36xf32, #tpu.memory_space<vmem>>, vector<1x36xf32>
    %471 = vector.broadcast %470 : vector<1x36xf32> to vector<12x36xf32>
    %472 = arith.mulf %471, %469 : vector<12x36xf32>
    %473 = arith.addf %467, %472 : vector<12x36xf32>
    %c10_401 = arith.constant 10 : index
    %c1_402 = arith.constant 1 : index
    %c0_403 = arith.constant 0 : index
    %474 = vector.load %arg5[%c10_401, %c1_402, %c0_403] : memref<15x16x36xf32, #tpu.memory_space<vmem>>, vector<1x12x36xf32>
    %475 = vector.shape_cast %474 : vector<1x12x36xf32> to vector<12x36xf32>
    %c55 = arith.constant 55 : index
    %c0_404 = arith.constant 0 : index
    %476 = vector.load %arg2[%c55, %c0_404] : memref<75x36xf32, #tpu.memory_space<vmem>>, vector<1x36xf32>
    %477 = vector.broadcast %476 : vector<1x36xf32> to vector<12x36xf32>
    %478 = arith.mulf %477, %475 : vector<12x36xf32>
    %479 = arith.addf %473, %478 : vector<12x36xf32>
    %c10_405 = arith.constant 10 : index
    %c2_406 = arith.constant 2 : index
    %c0_407 = arith.constant 0 : index
    %480 = vector.load %arg5[%c10_405, %c2_406, %c0_407] : memref<15x16x36xf32, #tpu.memory_space<vmem>>, vector<1x12x36xf32>
    %481 = vector.shape_cast %480 : vector<1x12x36xf32> to vector<12x36xf32>
    %c60 = arith.constant 60 : index
    %c0_408 = arith.constant 0 : index
    %482 = vector.load %arg2[%c60, %c0_408] : memref<75x36xf32, #tpu.memory_space<vmem>>, vector<1x36xf32>
    %483 = vector.broadcast %482 : vector<1x36xf32> to vector<12x36xf32>
    %484 = arith.mulf %483, %481 : vector<12x36xf32>
    %485 = arith.addf %479, %484 : vector<12x36xf32>
    %c10_409 = arith.constant 10 : index
    %c3_410 = arith.constant 3 : index
    %c0_411 = arith.constant 0 : index
    %486 = vector.load %arg5[%c10_409, %c3_410, %c0_411] : memref<15x16x36xf32, #tpu.memory_space<vmem>>, vector<1x12x36xf32>
    %487 = vector.shape_cast %486 : vector<1x12x36xf32> to vector<12x36xf32>
    %c65 = arith.constant 65 : index
    %c0_412 = arith.constant 0 : index
    %488 = vector.load %arg2[%c65, %c0_412] : memref<75x36xf32, #tpu.memory_space<vmem>>, vector<1x36xf32>
    %489 = vector.broadcast %488 : vector<1x36xf32> to vector<12x36xf32>
    %490 = arith.mulf %489, %487 : vector<12x36xf32>
    %491 = arith.addf %485, %490 : vector<12x36xf32>
    %c10_413 = arith.constant 10 : index
    %c4_414 = arith.constant 4 : index
    %c0_415 = arith.constant 0 : index
    %492 = vector.load %arg5[%c10_413, %c4_414, %c0_415] : memref<15x16x36xf32, #tpu.memory_space<vmem>>, vector<1x12x36xf32>
    %493 = vector.shape_cast %492 : vector<1x12x36xf32> to vector<12x36xf32>
    %c70 = arith.constant 70 : index
    %c0_416 = arith.constant 0 : index
    %494 = vector.load %arg2[%c70, %c0_416] : memref<75x36xf32, #tpu.memory_space<vmem>>, vector<1x36xf32>
    %495 = vector.broadcast %494 : vector<1x36xf32> to vector<12x36xf32>
    %496 = arith.mulf %495, %493 : vector<12x36xf32>
    %497 = arith.addf %491, %496 : vector<12x36xf32>
    %c11_417 = arith.constant 11 : index
    %c0_418 = arith.constant 0 : index
    %c0_419 = arith.constant 0 : index
    %498 = vector.load %arg5[%c11_417, %c0_418, %c0_419] : memref<15x16x36xf32, #tpu.memory_space<vmem>>, vector<1x12x36xf32>
    %499 = vector.shape_cast %498 : vector<1x12x36xf32> to vector<12x36xf32>
    %c51 = arith.constant 51 : index
    %c0_420 = arith.constant 0 : index
    %500 = vector.load %arg2[%c51, %c0_420] : memref<75x36xf32, #tpu.memory_space<vmem>>, vector<1x36xf32>
    %501 = vector.broadcast %500 : vector<1x36xf32> to vector<12x36xf32>
    %502 = arith.mulf %501, %499 : vector<12x36xf32>
    %503 = arith.addf %497, %502 : vector<12x36xf32>
    %c11_421 = arith.constant 11 : index
    %c1_422 = arith.constant 1 : index
    %c0_423 = arith.constant 0 : index
    %504 = vector.load %arg5[%c11_421, %c1_422, %c0_423] : memref<15x16x36xf32, #tpu.memory_space<vmem>>, vector<1x12x36xf32>
    %505 = vector.shape_cast %504 : vector<1x12x36xf32> to vector<12x36xf32>
    %c56 = arith.constant 56 : index
    %c0_424 = arith.constant 0 : index
    %506 = vector.load %arg2[%c56, %c0_424] : memref<75x36xf32, #tpu.memory_space<vmem>>, vector<1x36xf32>
    %507 = vector.broadcast %506 : vector<1x36xf32> to vector<12x36xf32>
    %508 = arith.mulf %507, %505 : vector<12x36xf32>
    %509 = arith.addf %503, %508 : vector<12x36xf32>
    %c11_425 = arith.constant 11 : index
    %c2_426 = arith.constant 2 : index
    %c0_427 = arith.constant 0 : index
    %510 = vector.load %arg5[%c11_425, %c2_426, %c0_427] : memref<15x16x36xf32, #tpu.memory_space<vmem>>, vector<1x12x36xf32>
    %511 = vector.shape_cast %510 : vector<1x12x36xf32> to vector<12x36xf32>
    %c61 = arith.constant 61 : index
    %c0_428 = arith.constant 0 : index
    %512 = vector.load %arg2[%c61, %c0_428] : memref<75x36xf32, #tpu.memory_space<vmem>>, vector<1x36xf32>
    %513 = vector.broadcast %512 : vector<1x36xf32> to vector<12x36xf32>
    %514 = arith.mulf %513, %511 : vector<12x36xf32>
    %515 = arith.addf %509, %514 : vector<12x36xf32>
    %c11_429 = arith.constant 11 : index
    %c3_430 = arith.constant 3 : index
    %c0_431 = arith.constant 0 : index
    %516 = vector.load %arg5[%c11_429, %c3_430, %c0_431] : memref<15x16x36xf32, #tpu.memory_space<vmem>>, vector<1x12x36xf32>
    %517 = vector.shape_cast %516 : vector<1x12x36xf32> to vector<12x36xf32>
    %c66 = arith.constant 66 : index
    %c0_432 = arith.constant 0 : index
    %518 = vector.load %arg2[%c66, %c0_432] : memref<75x36xf32, #tpu.memory_space<vmem>>, vector<1x36xf32>
    %519 = vector.broadcast %518 : vector<1x36xf32> to vector<12x36xf32>
    %520 = arith.mulf %519, %517 : vector<12x36xf32>
    %521 = arith.addf %515, %520 : vector<12x36xf32>
    %c11_433 = arith.constant 11 : index
    %c4_434 = arith.constant 4 : index
    %c0_435 = arith.constant 0 : index
    %522 = vector.load %arg5[%c11_433, %c4_434, %c0_435] : memref<15x16x36xf32, #tpu.memory_space<vmem>>, vector<1x12x36xf32>
    %523 = vector.shape_cast %522 : vector<1x12x36xf32> to vector<12x36xf32>
    %c71 = arith.constant 71 : index
    %c0_436 = arith.constant 0 : index
    %524 = vector.load %arg2[%c71, %c0_436] : memref<75x36xf32, #tpu.memory_space<vmem>>, vector<1x36xf32>
    %525 = vector.broadcast %524 : vector<1x36xf32> to vector<12x36xf32>
    %526 = arith.mulf %525, %523 : vector<12x36xf32>
    %527 = arith.addf %521, %526 : vector<12x36xf32>
    %c12_437 = arith.constant 12 : index
    %c0_438 = arith.constant 0 : index
    %c0_439 = arith.constant 0 : index
    %528 = vector.load %arg5[%c12_437, %c0_438, %c0_439] : memref<15x16x36xf32, #tpu.memory_space<vmem>>, vector<1x12x36xf32>
    %529 = vector.shape_cast %528 : vector<1x12x36xf32> to vector<12x36xf32>
    %c52 = arith.constant 52 : index
    %c0_440 = arith.constant 0 : index
    %530 = vector.load %arg2[%c52, %c0_440] : memref<75x36xf32, #tpu.memory_space<vmem>>, vector<1x36xf32>
    %531 = vector.broadcast %530 : vector<1x36xf32> to vector<12x36xf32>
    %532 = arith.mulf %531, %529 : vector<12x36xf32>
    %533 = arith.addf %527, %532 : vector<12x36xf32>
    %c12_441 = arith.constant 12 : index
    %c1_442 = arith.constant 1 : index
    %c0_443 = arith.constant 0 : index
    %534 = vector.load %arg5[%c12_441, %c1_442, %c0_443] : memref<15x16x36xf32, #tpu.memory_space<vmem>>, vector<1x12x36xf32>
    %535 = vector.shape_cast %534 : vector<1x12x36xf32> to vector<12x36xf32>
    %c57 = arith.constant 57 : index
    %c0_444 = arith.constant 0 : index
    %536 = vector.load %arg2[%c57, %c0_444] : memref<75x36xf32, #tpu.memory_space<vmem>>, vector<1x36xf32>
    %537 = vector.broadcast %536 : vector<1x36xf32> to vector<12x36xf32>
    %538 = arith.mulf %537, %535 : vector<12x36xf32>
    %539 = arith.addf %533, %538 : vector<12x36xf32>
    %c12_445 = arith.constant 12 : index
    %c2_446 = arith.constant 2 : index
    %c0_447 = arith.constant 0 : index
    %540 = vector.load %arg5[%c12_445, %c2_446, %c0_447] : memref<15x16x36xf32, #tpu.memory_space<vmem>>, vector<1x12x36xf32>
    %541 = vector.shape_cast %540 : vector<1x12x36xf32> to vector<12x36xf32>
    %c62 = arith.constant 62 : index
    %c0_448 = arith.constant 0 : index
    %542 = vector.load %arg2[%c62, %c0_448] : memref<75x36xf32, #tpu.memory_space<vmem>>, vector<1x36xf32>
    %543 = vector.broadcast %542 : vector<1x36xf32> to vector<12x36xf32>
    %544 = arith.mulf %543, %541 : vector<12x36xf32>
    %545 = arith.addf %539, %544 : vector<12x36xf32>
    %c12_449 = arith.constant 12 : index
    %c3_450 = arith.constant 3 : index
    %c0_451 = arith.constant 0 : index
    %546 = vector.load %arg5[%c12_449, %c3_450, %c0_451] : memref<15x16x36xf32, #tpu.memory_space<vmem>>, vector<1x12x36xf32>
    %547 = vector.shape_cast %546 : vector<1x12x36xf32> to vector<12x36xf32>
    %c67 = arith.constant 67 : index
    %c0_452 = arith.constant 0 : index
    %548 = vector.load %arg2[%c67, %c0_452] : memref<75x36xf32, #tpu.memory_space<vmem>>, vector<1x36xf32>
    %549 = vector.broadcast %548 : vector<1x36xf32> to vector<12x36xf32>
    %550 = arith.mulf %549, %547 : vector<12x36xf32>
    %551 = arith.addf %545, %550 : vector<12x36xf32>
    %c12_453 = arith.constant 12 : index
    %c4_454 = arith.constant 4 : index
    %c0_455 = arith.constant 0 : index
    %552 = vector.load %arg5[%c12_453, %c4_454, %c0_455] : memref<15x16x36xf32, #tpu.memory_space<vmem>>, vector<1x12x36xf32>
    %553 = vector.shape_cast %552 : vector<1x12x36xf32> to vector<12x36xf32>
    %c72 = arith.constant 72 : index
    %c0_456 = arith.constant 0 : index
    %554 = vector.load %arg2[%c72, %c0_456] : memref<75x36xf32, #tpu.memory_space<vmem>>, vector<1x36xf32>
    %555 = vector.broadcast %554 : vector<1x36xf32> to vector<12x36xf32>
    %556 = arith.mulf %555, %553 : vector<12x36xf32>
    %557 = arith.addf %551, %556 : vector<12x36xf32>
    %c13_457 = arith.constant 13 : index
    %c0_458 = arith.constant 0 : index
    %c0_459 = arith.constant 0 : index
    %558 = vector.load %arg5[%c13_457, %c0_458, %c0_459] : memref<15x16x36xf32, #tpu.memory_space<vmem>>, vector<1x12x36xf32>
    %559 = vector.shape_cast %558 : vector<1x12x36xf32> to vector<12x36xf32>
    %c53 = arith.constant 53 : index
    %c0_460 = arith.constant 0 : index
    %560 = vector.load %arg2[%c53, %c0_460] : memref<75x36xf32, #tpu.memory_space<vmem>>, vector<1x36xf32>
    %561 = vector.broadcast %560 : vector<1x36xf32> to vector<12x36xf32>
    %562 = arith.mulf %561, %559 : vector<12x36xf32>
    %563 = arith.addf %557, %562 : vector<12x36xf32>
    %c13_461 = arith.constant 13 : index
    %c1_462 = arith.constant 1 : index
    %c0_463 = arith.constant 0 : index
    %564 = vector.load %arg5[%c13_461, %c1_462, %c0_463] : memref<15x16x36xf32, #tpu.memory_space<vmem>>, vector<1x12x36xf32>
    %565 = vector.shape_cast %564 : vector<1x12x36xf32> to vector<12x36xf32>
    %c58 = arith.constant 58 : index
    %c0_464 = arith.constant 0 : index
    %566 = vector.load %arg2[%c58, %c0_464] : memref<75x36xf32, #tpu.memory_space<vmem>>, vector<1x36xf32>
    %567 = vector.broadcast %566 : vector<1x36xf32> to vector<12x36xf32>
    %568 = arith.mulf %567, %565 : vector<12x36xf32>
    %569 = arith.addf %563, %568 : vector<12x36xf32>
    %c13_465 = arith.constant 13 : index
    %c2_466 = arith.constant 2 : index
    %c0_467 = arith.constant 0 : index
    %570 = vector.load %arg5[%c13_465, %c2_466, %c0_467] : memref<15x16x36xf32, #tpu.memory_space<vmem>>, vector<1x12x36xf32>
    %571 = vector.shape_cast %570 : vector<1x12x36xf32> to vector<12x36xf32>
    %c63 = arith.constant 63 : index
    %c0_468 = arith.constant 0 : index
    %572 = vector.load %arg2[%c63, %c0_468] : memref<75x36xf32, #tpu.memory_space<vmem>>, vector<1x36xf32>
    %573 = vector.broadcast %572 : vector<1x36xf32> to vector<12x36xf32>
    %574 = arith.mulf %573, %571 : vector<12x36xf32>
    %575 = arith.addf %569, %574 : vector<12x36xf32>
    %c13_469 = arith.constant 13 : index
    %c3_470 = arith.constant 3 : index
    %c0_471 = arith.constant 0 : index
    %576 = vector.load %arg5[%c13_469, %c3_470, %c0_471] : memref<15x16x36xf32, #tpu.memory_space<vmem>>, vector<1x12x36xf32>
    %577 = vector.shape_cast %576 : vector<1x12x36xf32> to vector<12x36xf32>
    %c68 = arith.constant 68 : index
    %c0_472 = arith.constant 0 : index
    %578 = vector.load %arg2[%c68, %c0_472] : memref<75x36xf32, #tpu.memory_space<vmem>>, vector<1x36xf32>
    %579 = vector.broadcast %578 : vector<1x36xf32> to vector<12x36xf32>
    %580 = arith.mulf %579, %577 : vector<12x36xf32>
    %581 = arith.addf %575, %580 : vector<12x36xf32>
    %c13_473 = arith.constant 13 : index
    %c4_474 = arith.constant 4 : index
    %c0_475 = arith.constant 0 : index
    %582 = vector.load %arg5[%c13_473, %c4_474, %c0_475] : memref<15x16x36xf32, #tpu.memory_space<vmem>>, vector<1x12x36xf32>
    %583 = vector.shape_cast %582 : vector<1x12x36xf32> to vector<12x36xf32>
    %c73 = arith.constant 73 : index
    %c0_476 = arith.constant 0 : index
    %584 = vector.load %arg2[%c73, %c0_476] : memref<75x36xf32, #tpu.memory_space<vmem>>, vector<1x36xf32>
    %585 = vector.broadcast %584 : vector<1x36xf32> to vector<12x36xf32>
    %586 = arith.mulf %585, %583 : vector<12x36xf32>
    %587 = arith.addf %581, %586 : vector<12x36xf32>
    %c14_477 = arith.constant 14 : index
    %c0_478 = arith.constant 0 : index
    %c0_479 = arith.constant 0 : index
    %588 = vector.load %arg5[%c14_477, %c0_478, %c0_479] : memref<15x16x36xf32, #tpu.memory_space<vmem>>, vector<1x12x36xf32>
    %589 = vector.shape_cast %588 : vector<1x12x36xf32> to vector<12x36xf32>
    %c54 = arith.constant 54 : index
    %c0_480 = arith.constant 0 : index
    %590 = vector.load %arg2[%c54, %c0_480] : memref<75x36xf32, #tpu.memory_space<vmem>>, vector<1x36xf32>
    %591 = vector.broadcast %590 : vector<1x36xf32> to vector<12x36xf32>
    %592 = arith.mulf %591, %589 : vector<12x36xf32>
    %593 = arith.addf %587, %592 : vector<12x36xf32>
    %c14_481 = arith.constant 14 : index
    %c1_482 = arith.constant 1 : index
    %c0_483 = arith.constant 0 : index
    %594 = vector.load %arg5[%c14_481, %c1_482, %c0_483] : memref<15x16x36xf32, #tpu.memory_space<vmem>>, vector<1x12x36xf32>
    %595 = vector.shape_cast %594 : vector<1x12x36xf32> to vector<12x36xf32>
    %c59 = arith.constant 59 : index
    %c0_484 = arith.constant 0 : index
    %596 = vector.load %arg2[%c59, %c0_484] : memref<75x36xf32, #tpu.memory_space<vmem>>, vector<1x36xf32>
    %597 = vector.broadcast %596 : vector<1x36xf32> to vector<12x36xf32>
    %598 = arith.mulf %597, %595 : vector<12x36xf32>
    %599 = arith.addf %593, %598 : vector<12x36xf32>
    %c14_485 = arith.constant 14 : index
    %c2_486 = arith.constant 2 : index
    %c0_487 = arith.constant 0 : index
    %600 = vector.load %arg5[%c14_485, %c2_486, %c0_487] : memref<15x16x36xf32, #tpu.memory_space<vmem>>, vector<1x12x36xf32>
    %601 = vector.shape_cast %600 : vector<1x12x36xf32> to vector<12x36xf32>
    %c64 = arith.constant 64 : index
    %c0_488 = arith.constant 0 : index
    %602 = vector.load %arg2[%c64, %c0_488] : memref<75x36xf32, #tpu.memory_space<vmem>>, vector<1x36xf32>
    %603 = vector.broadcast %602 : vector<1x36xf32> to vector<12x36xf32>
    %604 = arith.mulf %603, %601 : vector<12x36xf32>
    %605 = arith.addf %599, %604 : vector<12x36xf32>
    %c14_489 = arith.constant 14 : index
    %c3_490 = arith.constant 3 : index
    %c0_491 = arith.constant 0 : index
    %606 = vector.load %arg5[%c14_489, %c3_490, %c0_491] : memref<15x16x36xf32, #tpu.memory_space<vmem>>, vector<1x12x36xf32>
    %607 = vector.shape_cast %606 : vector<1x12x36xf32> to vector<12x36xf32>
    %c69 = arith.constant 69 : index
    %c0_492 = arith.constant 0 : index
    %608 = vector.load %arg2[%c69, %c0_492] : memref<75x36xf32, #tpu.memory_space<vmem>>, vector<1x36xf32>
    %609 = vector.broadcast %608 : vector<1x36xf32> to vector<12x36xf32>
    %610 = arith.mulf %609, %607 : vector<12x36xf32>
    %611 = arith.addf %605, %610 : vector<12x36xf32>
    %c14_493 = arith.constant 14 : index
    %c4_494 = arith.constant 4 : index
    %c0_495 = arith.constant 0 : index
    %612 = vector.load %arg5[%c14_493, %c4_494, %c0_495] : memref<15x16x36xf32, #tpu.memory_space<vmem>>, vector<1x12x36xf32>
    %613 = vector.shape_cast %612 : vector<1x12x36xf32> to vector<12x36xf32>
    %c74 = arith.constant 74 : index
    %c0_496 = arith.constant 0 : index
    %614 = vector.load %arg2[%c74, %c0_496] : memref<75x36xf32, #tpu.memory_space<vmem>>, vector<1x36xf32>
    %615 = vector.broadcast %614 : vector<1x36xf32> to vector<12x36xf32>
    %616 = arith.mulf %615, %613 : vector<12x36xf32>
    %617 = arith.addf %611, %616 : vector<12x36xf32>
    %618 = arith.subf %617, %617 : vector<12x36xf32>
    %cst = arith.constant 0.000000e+00 : f32
    %619 = vector.broadcast %cst : f32 to vector<12x36xf32>
    %620 = arith.maximumf %618, %619 : vector<12x36xf32>
    %c0_497 = arith.constant 0 : index
    %c0_498 = arith.constant 0 : index
    %621 = vector.load %arg6[%c0_497, %c0_498] : memref<12x36xf32, #tpu.memory_space<vmem>>, vector<12x36xf32>
    tpu.vector_store %arg6[%c0_497, %c0_498], %620 {strides = array<i32>} : memref<12x36xf32, #tpu.memory_space<vmem>>, vector<12x36xf32>,
    %c0_499 = arith.constant 0 : index
    %c0_500 = arith.constant 0 : index
    %622 = vector.load %arg6[%c0_499, %c0_500] : memref<12x36xf32, #tpu.memory_space<vmem>>, vector<12x12xf32>
    %c0_501 = arith.constant 0 : index
    %c0_502 = arith.constant 0 : index
    %c0_503 = arith.constant 0 : index
    %c0_504 = arith.constant 0 : index
    %623 = vector.load %arg4[%c0_501, %c0_502, %c0_503, %c0_504] : memref<1x3x12x12xf32, #tpu.memory_space<vmem>>, vector<1x1x12x12xf32>
    %624 = vector.shape_cast %623 : vector<1x1x12x12xf32> to vector<12x12xf32>
    %625 = vector.shape_cast %622 : vector<12x12xf32> to vector<1x1x12x12xf32>
    tpu.vector_store %arg4[%c0_501, %c0_502, %c0_503, %c0_504], %625 {strides = array<i32>} : memref<1x3x12x12xf32, #tpu.memory_space<vmem>>, vector<1x1x12x12xf32>,
    %c0_505 = arith.constant 0 : index
    %c12_506 = arith.constant 12 : index
    %626 = vector.load %arg6[%c0_505, %c12_506] : memref<12x36xf32, #tpu.memory_space<vmem>>, vector<12x12xf32>
    %c0_507 = arith.constant 0 : index
    %c1_508 = arith.constant 1 : index
    %c0_509 = arith.constant 0 : index
    %c0_510 = arith.constant 0 : index
    %627 = vector.load %arg4[%c0_507, %c1_508, %c0_509, %c0_510] : memref<1x3x12x12xf32, #tpu.memory_space<vmem>>, vector<1x1x12x12xf32>
    %628 = vector.shape_cast %627 : vector<1x1x12x12xf32> to vector<12x12xf32>
    %629 = vector.shape_cast %626 : vector<12x12xf32> to vector<1x1x12x12xf32>
    tpu.vector_store %arg4[%c0_507, %c1_508, %c0_509, %c0_510], %629 {strides = array<i32>} : memref<1x3x12x12xf32, #tpu.memory_space<vmem>>, vector<1x1x12x12xf32>,
    %c0_511 = arith.constant 0 : index
    %c24_512 = arith.constant 24 : index
    %630 = vector.load %arg6[%c0_511, %c24_512] : memref<12x36xf32, #tpu.memory_space<vmem>>, vector<12x12xf32>
    %c0_513 = arith.constant 0 : index
    %c2_514 = arith.constant 2 : index
    %c0_515 = arith.constant 0 : index
    %c0_516 = arith.constant 0 : index
    %631 = vector.load %arg4[%c0_513, %c2_514, %c0_515, %c0_516] : memref<1x3x12x12xf32, #tpu.memory_space<vmem>>, vector<1x1x12x12xf32>
    %632 = vector.shape_cast %631 : vector<1x1x12x12xf32> to vector<12x12xf32>
    %633 = vector.shape_cast %630 : vector<12x12xf32> to vector<1x1x12x12xf32>
    tpu.vector_store %arg4[%c0_513, %c2_514, %c0_515, %c0_516], %633 {strides = array<i32>} : memref<1x3x12x12xf32, #tpu.memory_space<vmem>>, vector<1x1x12x12xf32>,
    return
  }
  func.func @transform_0(%arg0: i32) -> (i32, i32, i32, i32) {
    %c0_i32 = arith.constant 0 : i32
    %c0_i32_0 = arith.constant 0 : i32
    %c0_i32_1 = arith.constant 0 : i32
    %c0_i32_2 = arith.constant 0 : i32
    return %arg0, %c0_i32, %c0_i32_0, %c0_i32_1 : i32, i32, i32, i32
  }
  func.func @transform_1(%arg0: i32) -> (i32, i32) {
    %c0_i32 = arith.constant 0 : i32
    %c0_i32_0 = arith.constant 0 : i32
    %c0_i32_1 = arith.constant 0 : i32
    return %c0_i32, %c0_i32_0 : i32, i32
  }
  func.func @transform_2(%arg0: i32) -> (i32, i32) {
    %c0_i32 = arith.constant 0 : i32
    %c0_i32_0 = arith.constant 0 : i32
    %c0_i32_1 = arith.constant 0 : i32
    return %c0_i32, %c0_i32_0 : i32, i32
  }
  func.func @transform_3(%arg0: i32) -> (i32, i32, i32, i32) {
    %c0_i32 = arith.constant 0 : i32
    %c0_i32_0 = arith.constant 0 : i32
    %c0_i32_1 = arith.constant 0 : i32
    %c0_i32_2 = arith.constant 0 : i32
    return %arg0, %c0_i32, %c0_i32_0, %c0_i32_1 : i32, i32, i32, i32
  }
}

</mosaic_0001>

<llo_original>
// kernel: batched_forward.1
$region0: #{batched_forward.1}
  #allocation0 [shape = 'u32[]', space=smem, size = 0x4, offset = 0x4, fixed_abs, tag = 'smem constant byte address 0x4 - core index']
  #allocation1 [shape = 'u32[72,128]{1,0:T(1,128)}', space=vmem, size = 0x9000, scoped, tag = 'internal scratch']
  #allocation2 [shape = 'f32[15,16,36]{2,1,0:T(8,128)}', space=vmem, size = 0x1e000, scoped, tag = 'scratch operand']
  #allocation3 [shape = 'f32[12,36]{1,0:T(8,128)}', space=vmem, size = 0x2000, scoped, tag = 'scratch operand']
  %s0 = inlined_call_operand.vmem [shape: f32[2,3,16,16], index: 0, kind: input, shape index: {}]
  %s1 = inlined_call_operand.vmem [shape: f32[75,36], index: 1, kind: input, shape index: {}]
  %s2 = inlined_call_operand.vmem [shape: f32[1,36], index: 2, kind: input, shape index: {}]
  %s3 = inlined_call_operand.vmem [shape: f32[2,3,12,12], index: 3, kind: output, shape index: {}]
  %s4 = sld [smem:[#allocation0]]
  $region45: #{batched_forward.1} parent=0
    _
  %s6 = ssub.s32 1, %s4
  %s7 = scalar_select 0, %s6, %s4
  loop: start=0, step=1, limit=4
  $region2: #{batched_forward.1} parent=0 // loop_pre_header
    _
  $region3: #{batched_forward.1} parent=0 // loop_header
    %s9 = sphi 0, %s13
    %p10 = scmp.ge.s32.totalorder %s9, 4
    %s19 = sphi 0, %s21
    %s22 = sphi 0, %s19
    %s23 = sphi 0, %s22
    %s39 = sphi 0, %s23
    %s43 = sphi 0, %s43
    %s45 = sphi 0, %s43
    %s46 = sphi 0, %s45
    %s60 = sphi 0, %s46
    %s64 = sphi 0, %s64
    %s66 = sphi 0, %s64
    %s67 = sphi 0, %s66
    %s81 = sphi 0, %s67
    %s87 = sphi 0, %s89
    %s90 = sphi 0, %s87
    %s91 = sphi 0, %s90
    %s107 = sphi 0, %s91
  $region4: #{batched_forward.1} parent=0 // loop_header_branch
    %12 = sbr.rel (%p10) target = $region8
  $region5: #{batched_forward.1} parent=0 // loop_body
    %s14 = ssub.s32 %s9, 1
    %s15 = ssub.s32 %s9, 2
    %s16 = sadd.s32 %s9, 1
    %s17 = ssub.s32 %s9, %s16
    %p18 = scmp.eq.s32.totalorder %s17, 0
    %s20 = sadd.s32 %s19, 1
    %s21 = scalar_select %p18, %s19, %s20
    %p24 = pneg %p18
    %p25 = scmp.eq.s32.totalorder %s9, 1
    %p26 = por %p24, %p25
    %p27 = scmp.ne.s32.totalorder %s19, %s22
    %p28 = scmp.eq.s32.totalorder %s9, 0
    %p29 = por %p27, %p28
    %p30 = scmp.ne.s32.totalorder %s19, %s22
    %p31 = scmp.eq.s32.totalorder %s14, 1
    %p32 = por %p30, %p31
    %p33 = scmp.ne.s32.totalorder %s22, %s23
    %p34 = scmp.eq.s32.totalorder %s14, 0
    %p35 = por %p33, %p34
    %p36 = scmp.ne.s32.totalorder %s22, %s23
    %p37 = scmp.eq.s32.totalorder %s15, 1
    %p38 = por %p36, %p37
    %p40 = scmp.ne.s32.totalorder %s23, %s39
    %p41 = scmp.eq.s32.totalorder %s15, 0
    %p42 = por %p40, %p41
    %s44 = sadd.s32 %s43, 1
    %p47 = scmp.eq.s32.totalorder %s9, 1
    %p48 = scmp.ne.s32.totalorder %s43, %s45
    %p49 = scmp.eq.s32.totalorder %s9, 0
    %p50 = por %p48, %p49
    %p51 = scmp.ne.s32.totalorder %s43, %s45
    %p52 = scmp.eq.s32.totalorder %s14, 1
    %p53 = por %p51, %p52
    %p54 = scmp.ne.s32.totalorder %s45, %s46
    %p55 = scmp.eq.s32.totalorder %s14, 0
    %p56 = por %p54, %p55
    %p57 = scmp.ne.s32.totalorder %s45, %s46
    %p58 = scmp.eq.s32.totalorder %s15, 1
    %p59 = por %p57, %p58
    %p61 = scmp.ne.s32.totalorder %s46, %s60
    %p62 = scmp.eq.s32.totalorder %s15, 0
    %p63 = por %p61, %p62
    %s65 = sadd.s32 %s64, 1
    %p68 = scmp.eq.s32.totalorder %s9, 1
    %p69 = scmp.ne.s32.totalorder %s64, %s66
    %p70 = scmp.eq.s32.totalorder %s9, 0
    %p71 = por %p69, %p70
    %p72 = scmp.ne.s32.totalorder %s64, %s66
    %p73 = scmp.eq.s32.totalorder %s14, 1
    %p74 = por %p72, %p73
    %p75 = scmp.ne.s32.totalorder %s66, %s67
    %p76 = scmp.eq.s32.totalorder %s14, 0
    %p77 = por %p75, %p76
    %p78 = scmp.ne.s32.totalorder %s66, %s67
    %p79 = scmp.eq.s32.totalorder %s15, 1
    %p80 = por %p78, %p79
    %p82 = scmp.ne.s32.totalorder %s67, %s81
    %p83 = scmp.eq.s32.totalorder %s15, 0
    %p84 = por %p82, %p83
    %s85 = ssub.s32 %s9, %s16
    %p86 = scmp.eq.s32.totalorder %s85, 0
    %s88 = sadd.s32 %s87, 1
    %s89 = scalar_select %p86, %s87, %s88
    %p92 = pneg %p86
    %p93 = scmp.eq.s32.totalorder %s9, 1
    %p94 = por %p92, %p93
    %p95 = scmp.ne.s32.totalorder %s87, %s90
    %p96 = scmp.eq.s32.totalorder %s9, 0
    %p97 = por %p95, %p96
    %p98 = scmp.ne.s32.totalorder %s87, %s90
    %p99 = scmp.eq.s32.totalorder %s14, 1
    %p100 = por %p98, %p99
    %p101 = scmp.ne.s32.totalorder %s90, %s91
    %p102 = scmp.eq.s32.totalorder %s14, 0
    %p103 = por %p101, %p102
    %p104 = scmp.ne.s32.totalorder %s90, %s91
    %p105 = scmp.eq.s32.totalorder %s15, 1
    %p106 = por %p104, %p105
    %p108 = scmp.ne.s32.totalorder %s91, %s107
    %p109 = scmp.eq.s32.totalorder %s15, 0
    %p110 = por %p108, %p109
    %p111 = scmp.le.s32.totalorder 1, %s9
    %p112 = scmp.lt.s32.totalorder %s9, 3
    %p113 = pnand %p111, %p112
    %p114 = pneg %p113
    // Predicated region
    $region9: #{batched_forward.1} parent=5 // pred_check
      _
    $region10: #{batched_forward.1} parent=5 // pred_check_branch
      %116 = sbr.rel (%p113) target = $region12
    $region11: #{batched_forward.1} parent=5 // pred_region
      %s117 = ssub.s32 %s9, 1
      // Predicated region
      $region13: #{batched_forward.1} parent=11 // pred_check
        %p118 = pneg %p56
      $region14: #{batched_forward.1} parent=11 // pred_check_branch
        %120 = sbr.rel (%p118) target = $region16
      $region15: #{batched_forward.1} parent=11 // pred_region
        _
      $region16: #{batched_forward.1} parent=11 // pred_fallthru
        _
      // Predicated region
      $region17: #{batched_forward.1} parent=11 // pred_check
        %p121 = pneg %p77
      $region18: #{batched_forward.1} parent=11 // pred_check_branch
        %123 = sbr.rel (%p121) target = $region20
      $region19: #{batched_forward.1} parent=11 // pred_region
        _
      $region20: #{batched_forward.1} parent=11 // pred_fallthru
        _
    $region12: #{batched_forward.1} parent=5 // pred_fallthru
      _
    %p124 = scmp.lt.s32.totalorder %s9, 2
    // Predicated region
    $region21: #{batched_forward.1} parent=5 // pred_check
      %p125 = pneg %p124
    $region22: #{batched_forward.1} parent=5 // pred_check_branch
      %127 = sbr.rel (%p125) target = $region24
    $region23: #{batched_forward.1} parent=5 // pred_region
      // Predicated region
      $region25: #{batched_forward.1} parent=23 // pred_check
        %p128 = pneg %p29
      $region26: #{batched_forward.1} parent=23 // pred_check_branch
        %130 = sbr.rel (%p128) target = $region28
      $region27: #{batched_forward.1} parent=23 // pred_region
        %p131 = scmp.lt.s32.totalorder %s9, 1
        %s132 = scalar_select %p131, %s9, 1
        %s133 = smul.addr %s132, 6
        %s134 = smul.addr %s133, 8
        %s135 = scalar_lea.vmem %s0, %s134
      $region28: #{batched_forward.1} parent=23 // pred_fallthru
        _
    $region24: #{batched_forward.1} parent=5 // pred_fallthru
      _
    %p136 = scmp.le.s32.totalorder 1, %s9
    %p137 = scmp.lt.s32.totalorder %s9, 3
    %p138 = pnand %p136, %p137
    %p139 = pneg %p138
    // Predicated region
    $region29: #{batched_forward.1} parent=5 // pred_check
      _
    $region30: #{batched_forward.1} parent=5 // pred_check_branch
      %141 = sbr.rel (%p138) target = $region32
    $region31: #{batched_forward.1} parent=5 // pred_region
      %s142 = ssub.s32 %s9, 1
      %p143 = scmp.lt.s32.totalorder %s14, 1
      %s144 = scalar_select %p143, %s14, 1
      %s145 = smul.addr %s144, 6
      %s146 = smul.addr %s145, 8
      %s147 = scalar_lea.vmem %s0, %s146
      %p148 = pneg %p35
      %p149 = pneg %p32
      %p150 = pneg %p56
      %p151 = pneg %p53
      %p152 = pneg %p77
      %p153 = pneg %p74
      %p154 = pneg %p103
      %p155 = pneg %p100
      %p156 = scmp.lt.s32.totalorder %s14, 1
      %s157 = scalar_select %p156, %s14, 1
      %s158 = smul.addr %s157, 6
      %s159 = smul.addr %s158, 8
      %s160 = scalar_lea.vmem %s3, %s159
      %p161 = scmp.lt.s32.totalorder %s14, 1
      %s162 = scalar_select %p161, %s14, 1
      %s163 = smul.addr %s162, 6
      %s164 = smul.addr %s163, 8
      %s165 = scalar_lea.vmem %s0, %s164
      %p166 = scmp.lt.s32.totalorder %s14, 1
      %s167 = scalar_select %p166, %s14, 1
      %s168 = smul.addr %s167, 6
      %s169 = smul.addr %s168, 8
      %s170 = scalar_lea.vmem %s3, %s169
      %v171 = vld [vmem:[%s165] sm:$0xff]
      %v172 = vld [vmem:[%s165 + $0x8] sm:$0xff]
      %vm173 = vcmask 97280
      %174 = vst.msk [vmem:[#allocation2] sm:$0xff] %vm173, %v171
      %175 = vst.msk [vmem:[#allocation2 + $0x8] sm:$0xff] %vm173, %v172
      %178 = vrot.lane.b32.xlu0 %v171, 12
      %v179 = vpop.permute.xlu0 %178
      %180 = vrot.lane.b32.xlu0 %v172, 12
      %v181 = vpop.permute.xlu0 %180
      %vm184 = vcmask 195680
      %185 = vst.msk [vmem:[#allocation2] sm:$0xff] %vm184, %v179
      %186 = vst.msk [vmem:[#allocation2 + $0x8] sm:$0xff] %vm184, %v181
      %187 = vrot.lane.b32.xlu0 %v171, 24
      %v188 = vpop.permute.xlu0 %187
      %189 = vrot.lane.b32.xlu0 %v172, 24
      %v190 = vpop.permute.xlu0 %189
      %vm193 = vcmask 294080
      %194 = vst.msk [vmem:[#allocation2] sm:$0xff] %vm193, %v188
      %195 = vst.msk [vmem:[#allocation2 + $0x8] sm:$0xff] %vm193, %v190
      %v196 = vld [vmem:[%s165] sm:$0xff]
      %v197 = vld [vmem:[%s165 + $0x8] sm:$0xff]
      %200 = vrot.lane.b32.xlu0 %v196, 127
      %v201 = vpop.permute.xlu0 %200
      %202 = vrot.lane.b32.xlu0 %v197, 127
      %v203 = vpop.permute.xlu0 %202
      %s206 = scalar_lea.vmem [#allocation2], 16
      %207 = vst.msk [vmem:[%s206] sm:$0xff] %vm173, %v201
      %208 = vst.msk [vmem:[%s206 + $0x8] sm:$0xff] %vm173, %v203
      %209 = vrot.lane.b32.xlu0 %v196, 11
      %v210 = vpop.permute.xlu0 %209
      %211 = vrot.lane.b32.xlu0 %v197, 11
      %v212 = vpop.permute.xlu0 %211
      %215 = vst.msk [vmem:[%s206] sm:$0xff] %vm184, %v210
      %216 = vst.msk [vmem:[%s206 + $0x8] sm:$0xff] %vm184, %v212
      %217 = vrot.lane.b32.xlu0 %v196, 23
      %v218 = vpop.permute.xlu0 %217
      %219 = vrot.lane.b32.xlu0 %v197, 23
      %v220 = vpop.permute.xlu0 %219
      %223 = vst.msk [vmem:[%s206] sm:$0xff] %vm193, %v218
      %224 = vst.msk [vmem:[%s206 + $0x8] sm:$0xff] %vm193, %v220
      %v225 = vld [vmem:[%s165] sm:$0xff]
      %v226 = vld [vmem:[%s165 + $0x8] sm:$0xff]
      %229 = vrot.lane.b32.xlu0 %v225, 126
      %v230 = vpop.permute.xlu0 %229
      %231 = vrot.lane.b32.xlu0 %v226, 126
      %v232 = vpop.permute.xlu0 %231
      %s235 = scalar_lea.vmem [#allocation2], 32
      %236 = vst.msk [vmem:[%s235] sm:$0xff] %vm173, %v230
      %237 = vst.msk [vmem:[%s235 + $0x8] sm:$0xff] %vm173, %v232
      %238 = vrot.lane.b32.xlu0 %v225, 10
      %v239 = vpop.permute.xlu0 %238
      %240 = vrot.lane.b32.xlu0 %v226, 10
      %v241 = vpop.permute.xlu0 %240
      %244 = vst.msk [vmem:[%s235] sm:$0xff] %vm184, %v239
      %245 = vst.msk [vmem:[%s235 + $0x8] sm:$0xff] %vm184, %v241
      %246 = vrot.lane.b32.xlu0 %v225, 22
      %v247 = vpop.permute.xlu0 %246
      %248 = vrot.lane.b32.xlu0 %v226, 22
      %v249 = vpop.permute.xlu0 %248
      %252 = vst.msk [vmem:[%s235] sm:$0xff] %vm193, %v247
      %253 = vst.msk [vmem:[%s235 + $0x8] sm:$0xff] %vm193, %v249
      %v254 = vld [vmem:[%s165] sm:$0xff]
      %v255 = vld [vmem:[%s165 + $0x8] sm:$0xff]
      %258 = vrot.lane.b32.xlu0 %v254, 125
      %v259 = vpop.permute.xlu0 %258
      %260 = vrot.lane.b32.xlu0 %v255, 125
      %v261 = vpop.permute.xlu0 %260
      %s264 = scalar_lea.vmem [#allocation2], 48
      %265 = vst.msk [vmem:[%s264] sm:$0xff] %vm173, %v259
      %266 = vst.msk [vmem:[%s264 + $0x8] sm:$0xff] %vm173, %v261
      %267 = vrot.lane.b32.xlu0 %v254, 9
      %v268 = vpop.permute.xlu0 %267
      %269 = vrot.lane.b32.xlu0 %v255, 9
      %v270 = vpop.permute.xlu0 %269
      %273 = vst.msk [vmem:[%s264] sm:$0xff] %vm184, %v268
      %274 = vst.msk [vmem:[%s264 + $0x8] sm:$0xff] %vm184, %v270
      %275 = vrot.lane.b32.xlu0 %v254, 21
      %v276 = vpop.permute.xlu0 %275
      %277 = vrot.lane.b32.xlu0 %v255, 21
      %v278 = vpop.permute.xlu0 %277
      %281 = vst.msk [vmem:[%s264] sm:$0xff] %vm193, %v276
      %282 = vst.msk [vmem:[%s264 + $0x8] sm:$0xff] %vm193, %v278
      %v283 = vld [vmem:[%s165] sm:$0xff]
      %v284 = vld [vmem:[%s165 + $0x8] sm:$0xff]
      %287 = vrot.lane.b32.xlu0 %v283, 124
      %v288 = vpop.permute.xlu0 %287
      %289 = vrot.lane.b32.xlu0 %v284, 124
      %v290 = vpop.permute.xlu0 %289
      %s293 = scalar_lea.vmem [#allocation2], 64
      %294 = vst.msk [vmem:[%s293] sm:$0xff] %vm173, %v288
      %295 = vst.msk [vmem:[%s293 + $0x8] sm:$0xff] %vm173, %v290
      %296 = vrot.lane.b32.xlu0 %v283, 8
      %v297 = vpop.permute.xlu0 %296
      %298 = vrot.lane.b32.xlu0 %v284, 8
      %v299 = vpop.permute.xlu0 %298
      %302 = vst.msk [vmem:[%s293] sm:$0xff] %vm184, %v297
      %303 = vst.msk [vmem:[%s293 + $0x8] sm:$0xff] %vm184, %v299
      %304 = vrot.lane.b32.xlu0 %v283, 20
      %v305 = vpop.permute.xlu0 %304
      %306 = vrot.lane.b32.xlu0 %v284, 20
      %v307 = vpop.permute.xlu0 %306
      %310 = vst.msk [vmem:[%s293] sm:$0xff] %vm193, %v305
      %311 = vst.msk [vmem:[%s293 + $0x8] sm:$0xff] %vm193, %v307
      %s312 = scalar_lea.vmem %s165, 16
      %v313 = vld [vmem:[%s312] sm:$0xff]
      %v314 = vld [vmem:[%s312 + $0x8] sm:$0xff]
      %s315 = scalar_lea.vmem [#allocation2], 80
      %316 = vst.msk [vmem:[%s315] sm:$0xff] %vm173, %v313
      %317 = vst.msk [vmem:[%s315 + $0x8] sm:$0xff] %vm173, %v314
      %320 = vrot.lane.b32.xlu0 %v313, 12
      %v321 = vpop.permute.xlu0 %320
      %322 = vrot.lane.b32.xlu0 %v314, 12
      %v323 = vpop.permute.xlu0 %322
      %326 = vst.msk [vmem:[%s315] sm:$0xff] %vm184, %v321
      %327 = vst.msk [vmem:[%s315 + $0x8] sm:$0xff] %vm184, %v323
      %328 = vrot.lane.b32.xlu0 %v313, 24
      %v329 = vpop.permute.xlu0 %328
      %330 = vrot.lane.b32.xlu0 %v314, 24
      %v331 = vpop.permute.xlu0 %330
      %334 = vst.msk [vmem:[%s315] sm:$0xff] %vm193, %v329
      %335 = vst.msk [vmem:[%s315 + $0x8] sm:$0xff] %vm193, %v331
      %v336 = vld [vmem:[%s312] sm:$0xff]
      %v337 = vld [vmem:[%s312 + $0x8] sm:$0xff]
      %340 = vrot.lane.b32.xlu0 %v336, 127
      %v341 = vpop.permute.xlu0 %340
      %342 = vrot.lane.b32.xlu0 %v337, 127
      %v343 = vpop.permute.xlu0 %342
      %s346 = scalar_lea.vmem [#allocation2], 96
      %347 = vst.msk [vmem:[%s346] sm:$0xff] %vm173, %v341
      %348 = vst.msk [vmem:[%s346 + $0x8] sm:$0xff] %vm173, %v343
      %349 = vrot.lane.b32.xlu0 %v336, 11
      %v350 = vpop.permute.xlu0 %349
      %351 = vrot.lane.b32.xlu0 %v337, 11
      %v352 = vpop.permute.xlu0 %351
      %355 = vst.msk [vmem:[%s346] sm:$0xff] %vm184, %v350
      %356 = vst.msk [vmem:[%s346 + $0x8] sm:$0xff] %vm184, %v352
      %357 = vrot.lane.b32.xlu0 %v336, 23
      %v358 = vpop.permute.xlu0 %357
      %359 = vrot.lane.b32.xlu0 %v337, 23
      %v360 = vpop.permute.xlu0 %359
      %363 = vst.msk [vmem:[%s346] sm:$0xff] %vm193, %v358
      %364 = vst.msk [vmem:[%s346 + $0x8] sm:$0xff] %vm193, %v360
      %v365 = vld [vmem:[%s312] sm:$0xff]
      %v366 = vld [vmem:[%s312 + $0x8] sm:$0xff]
      %369 = vrot.lane.b32.xlu0 %v365, 126
      %v370 = vpop.permute.xlu0 %369
      %371 = vrot.lane.b32.xlu0 %v366, 126
      %v372 = vpop.permute.xlu0 %371
      %s375 = scalar_lea.vmem [#allocation2], 112
      %376 = vst.msk [vmem:[%s375] sm:$0xff] %vm173, %v370
      %377 = vst.msk [vmem:[%s375 + $0x8] sm:$0xff] %vm173, %v372
      %378 = vrot.lane.b32.xlu0 %v365, 10
      %v379 = vpop.permute.xlu0 %378
      %380 = vrot.lane.b32.xlu0 %v366, 10
      %v381 = vpop.permute.xlu0 %380
      %384 = vst.msk [vmem:[%s375] sm:$0xff] %vm184, %v379
      %385 = vst.msk [vmem:[%s375 + $0x8] sm:$0xff] %vm184, %v381
      %386 = vrot.lane.b32.xlu0 %v365, 22
      %v387 = vpop.permute.xlu0 %386
      %388 = vrot.lane.b32.xlu0 %v366, 22
      %v389 = vpop.permute.xlu0 %388
      %392 = vst.msk [vmem:[%s375] sm:$0xff] %vm193, %v387
      %393 = vst.msk [vmem:[%s375 + $0x8] sm:$0xff] %vm193, %v389
      %v394 = vld [vmem:[%s312] sm:$0xff]
      %v395 = vld [vmem:[%s312 + $0x8] sm:$0xff]
      %398 = vrot.lane.b32.xlu0 %v394, 125
      %v399 = vpop.permute.xlu0 %398
      %400 = vrot.lane.b32.xlu0 %v395, 125
      %v401 = vpop.permute.xlu0 %400
      %s404 = scalar_lea.vmem [#allocation2], 128
      %405 = vst.msk [vmem:[%s404] sm:$0xff] %vm173, %v399
      %406 = vst.msk [vmem:[%s404 + $0x8] sm:$0xff] %vm173, %v401
      %407 = vrot.lane.b32.xlu0 %v394, 9
      %v408 = vpop.permute.xlu0 %407
      %409 = vrot.lane.b32.xlu0 %v395, 9
      %v410 = vpop.permute.xlu0 %409
      %413 = vst.msk [vmem:[%s404] sm:$0xff] %vm184, %v408
      %414 = vst.msk [vmem:[%s404 + $0x8] sm:$0xff] %vm184, %v410
      %415 = vrot.lane.b32.xlu0 %v394, 21
      %v416 = vpop.permute.xlu0 %415
      %417 = vrot.lane.b32.xlu0 %v395, 21
      %v418 = vpop.permute.xlu0 %417
      %421 = vst.msk [vmem:[%s404] sm:$0xff] %vm193, %v416
      %422 = vst.msk [vmem:[%s404 + $0x8] sm:$0xff] %vm193, %v418
      %v423 = vld [vmem:[%s312] sm:$0xff]
      %v424 = vld [vmem:[%s312 + $0x8] sm:$0xff]
      %427 = vrot.lane.b32.xlu0 %v423, 124
      %v428 = vpop.permute.xlu0 %427
      %429 = vrot.lane.b32.xlu0 %v424, 124
      %v430 = vpop.permute.xlu0 %429
      %s433 = scalar_lea.vmem [#allocation2], 144
      %434 = vst.msk [vmem:[%s433] sm:$0xff] %vm173, %v428
      %435 = vst.msk [vmem:[%s433 + $0x8] sm:$0xff] %vm173, %v430
      %436 = vrot.lane.b32.xlu0 %v423, 8
      %v437 = vpop.permute.xlu0 %436
      %438 = vrot.lane.b32.xlu0 %v424, 8
      %v439 = vpop.permute.xlu0 %438
      %442 = vst.msk [vmem:[%s433] sm:$0xff] %vm184, %v437
      %443 = vst.msk [vmem:[%s433 + $0x8] sm:$0xff] %vm184, %v439
      %444 = vrot.lane.b32.xlu0 %v423, 20
      %v445 = vpop.permute.xlu0 %444
      %446 = vrot.lane.b32.xlu0 %v424, 20
      %v447 = vpop.permute.xlu0 %446
      %450 = vst.msk [vmem:[%s433] sm:$0xff] %vm193, %v445
      %451 = vst.msk [vmem:[%s433 + $0x8] sm:$0xff] %vm193, %v447
      %s452 = scalar_lea.vmem %s165, 32
      %v453 = vld [vmem:[%s452] sm:$0xff]
      %v454 = vld [vmem:[%s452 + $0x8] sm:$0xff]
      %s455 = scalar_lea.vmem [#allocation2], 160
      %456 = vst.msk [vmem:[%s455] sm:$0xff] %vm173, %v453
      %457 = vst.msk [vmem:[%s455 + $0x8] sm:$0xff] %vm173, %v454
      %460 = vrot.lane.b32.xlu0 %v453, 12
      %v461 = vpop.permute.xlu0 %460
      %462 = vrot.lane.b32.xlu0 %v454, 12
      %v463 = vpop.permute.xlu0 %462
      %466 = vst.msk [vmem:[%s455] sm:$0xff] %vm184, %v461
      %467 = vst.msk [vmem:[%s455 + $0x8] sm:$0xff] %vm184, %v463
      %468 = vrot.lane.b32.xlu0 %v453, 24
      %v469 = vpop.permute.xlu0 %468
      %470 = vrot.lane.b32.xlu0 %v454, 24
      %v471 = vpop.permute.xlu0 %470
      %474 = vst.msk [vmem:[%s455] sm:$0xff] %vm193, %v469
      %475 = vst.msk [vmem:[%s455 + $0x8] sm:$0xff] %vm193, %v471
      %v476 = vld [vmem:[%s452] sm:$0xff]
      %v477 = vld [vmem:[%s452 + $0x8] sm:$0xff]
      %480 = vrot.lane.b32.xlu0 %v476, 127
      %v481 = vpop.permute.xlu0 %480
      %482 = vrot.lane.b32.xlu0 %v477, 127
      %v483 = vpop.permute.xlu0 %482
      %s486 = scalar_lea.vmem [#allocation2], 176
      %487 = vst.msk [vmem:[%s486] sm:$0xff] %vm173, %v481
      %488 = vst.msk [vmem:[%s486 + $0x8] sm:$0xff] %vm173, %v483
      %489 = vrot.lane.b32.xlu0 %v476, 11
      %v490 = vpop.permute.xlu0 %489
      %491 = vrot.lane.b32.xlu0 %v477, 11
      %v492 = vpop.permute.xlu0 %491
      %495 = vst.msk [vmem:[%s486] sm:$0xff] %vm184, %v490
      %496 = vst.msk [vmem:[%s486 + $0x8] sm:$0xff] %vm184, %v492
      %497 = vrot.lane.b32.xlu0 %v476, 23
      %v498 = vpop.permute.xlu0 %497
      %499 = vrot.lane.b32.xlu0 %v477, 23
      %v500 = vpop.permute.xlu0 %499
      %503 = vst.msk [vmem:[%s486] sm:$0xff] %vm193, %v498
      %504 = vst.msk [vmem:[%s486 + $0x8] sm:$0xff] %vm193, %v500
      %v505 = vld [vmem:[%s452] sm:$0xff]
      %v506 = vld [vmem:[%s452 + $0x8] sm:$0xff]
      %509 = vrot.lane.b32.xlu0 %v505, 126
      %v510 = vpop.permute.xlu0 %509
      %511 = vrot.lane.b32.xlu0 %v506, 126
      %v512 = vpop.permute.xlu0 %511
      %s515 = scalar_lea.vmem [#allocation2], 192
      %516 = vst.msk [vmem:[%s515] sm:$0xff] %vm173, %v510
      %517 = vst.msk [vmem:[%s515 + $0x8] sm:$0xff] %vm173, %v512
      %518 = vrot.lane.b32.xlu0 %v505, 10
      %v519 = vpop.permute.xlu0 %518
      %520 = vrot.lane.b32.xlu0 %v506, 10
      %v521 = vpop.permute.xlu0 %520
      %524 = vst.msk [vmem:[%s515] sm:$0xff] %vm184, %v519
      %525 = vst.msk [vmem:[%s515 + $0x8] sm:$0xff] %vm184, %v521
      %526 = vrot.lane.b32.xlu0 %v505, 22
      %v527 = vpop.permute.xlu0 %526
      %528 = vrot.lane.b32.xlu0 %v506, 22
      %v529 = vpop.permute.xlu0 %528
      %532 = vst.msk [vmem:[%s515] sm:$0xff] %vm193, %v527
      %533 = vst.msk [vmem:[%s515 + $0x8] sm:$0xff] %vm193, %v529
      %v534 = vld [vmem:[%s452] sm:$0xff]
      %v535 = vld [vmem:[%s452 + $0x8] sm:$0xff]
      %538 = vrot.lane.b32.xlu0 %v534, 125
      %v539 = vpop.permute.xlu0 %538
      %540 = vrot.lane.b32.xlu0 %v535, 125
      %v541 = vpop.permute.xlu0 %540
      %s544 = scalar_lea.vmem [#allocation2], 208
      %545 = vst.msk [vmem:[%s544] sm:$0xff] %vm173, %v539
      %546 = vst.msk [vmem:[%s544 + $0x8] sm:$0xff] %vm173, %v541
      %547 = vrot.lane.b32.xlu0 %v534, 9
      %v548 = vpop.permute.xlu0 %547
      %549 = vrot.lane.b32.xlu0 %v535, 9
      %v550 = vpop.permute.xlu0 %549
      %553 = vst.msk [vmem:[%s544] sm:$0xff] %vm184, %v548
      %554 = vst.msk [vmem:[%s544 + $0x8] sm:$0xff] %vm184, %v550
      %555 = vrot.lane.b32.xlu0 %v534, 21
      %v556 = vpop.permute.xlu0 %555
      %557 = vrot.lane.b32.xlu0 %v535, 21
      %v558 = vpop.permute.xlu0 %557
      %561 = vst.msk [vmem:[%s544] sm:$0xff] %vm193, %v556
      %562 = vst.msk [vmem:[%s544 + $0x8] sm:$0xff] %vm193, %v558
      %v563 = vld [vmem:[%s452] sm:$0xff]
      %v564 = vld [vmem:[%s452 + $0x8] sm:$0xff]
      %567 = vrot.lane.b32.xlu0 %v563, 124
      %v568 = vpop.permute.xlu0 %567
      %569 = vrot.lane.b32.xlu0 %v564, 124
      %v570 = vpop.permute.xlu0 %569
      %s573 = scalar_lea.vmem [#allocation2], 224
      %574 = vst.msk [vmem:[%s573] sm:$0xff] %vm173, %v568
      %575 = vst.msk [vmem:[%s573 + $0x8] sm:$0xff] %vm173, %v570
      %576 = vrot.lane.b32.xlu0 %v563, 8
      %v577 = vpop.permute.xlu0 %576
      %578 = vrot.lane.b32.xlu0 %v564, 8
      %v579 = vpop.permute.xlu0 %578
      %582 = vst.msk [vmem:[%s573] sm:$0xff] %vm184, %v577
      %583 = vst.msk [vmem:[%s573 + $0x8] sm:$0xff] %vm184, %v579
      %584 = vrot.lane.b32.xlu0 %v563, 20
      %v585 = vpop.permute.xlu0 %584
      %586 = vrot.lane.b32.xlu0 %v564, 20
      %v587 = vpop.permute.xlu0 %586
      %590 = vst.msk [vmem:[%s573] sm:$0xff] %vm193, %v585
      %591 = vst.msk [vmem:[%s573 + $0x8] sm:$0xff] %vm193, %v587
      %v592 = vld [vmem:[%s2] sm:$0x1]
      %v594 = vperm.slane %v592, 0
      %v596 = vld [vmem:[#allocation2] sm:$0xff]
      %v597 = vld [vmem:[#allocation2 + $0x8] sm:$0xf]
      %v598 = vld [vmem:[%s1] sm:$0x1]
      %v599 = vperm.slane %v598, 0
      %v600 = vmul.f32 %v599, %v596
      %v601 = vmul.f32 %v599, %v597
      %v602 = vadd.f32 %v594, %v600
      %v603 = vadd.f32 %v594, %v601
      %v604 = vld [vmem:[#allocation2 + $0x1] sm:$0xff]
      %v605 = vld [vmem:[#allocation2 + $0x9] sm:$0xf]
      %v606 = vld [vmem:[%s1 + $0x5] sm:$0x1]
      %v607 = vperm.slane %v606, 0
      %v608 = vmul.f32 %v607, %v604
      %v609 = vmul.f32 %v607, %v605
      %v610 = vadd.f32 %v602, %v608
      %v611 = vadd.f32 %v603, %v609
      %v612 = vld [vmem:[#allocation2 + $0x2] sm:$0xff]
      %v613 = vld [vmem:[#allocation2 + $0xa] sm:$0xf]
      %v614 = vld [vmem:[%s1 + $0xa] sm:$0x1]
      %v615 = vperm.slane %v614, 0
      %v616 = vmul.f32 %v615, %v612
      %v617 = vmul.f32 %v615, %v613
      %v618 = vadd.f32 %v610, %v616
      %v619 = vadd.f32 %v611, %v617
      %v620 = vld [vmem:[#allocation2 + $0x3] sm:$0xff]
      %v621 = vld [vmem:[#allocation2 + $0xb] sm:$0xf]
      %v622 = vld [vmem:[%s1 + $0xf] sm:$0x1]
      %v623 = vperm.slane %v622, 0
      %v624 = vmul.f32 %v623, %v620
      %v625 = vmul.f32 %v623, %v621
      %v626 = vadd.f32 %v618, %v624
      %v627 = vadd.f32 %v619, %v625
      %v628 = vld [vmem:[#allocation2 + $0x4] sm:$0xff]
      %v629 = vld [vmem:[#allocation2 + $0xc] sm:$0xf]
      %v630 = vld [vmem:[%s1 + $0x14] sm:$0x1]
      %v631 = vperm.slane %v630, 0
      %v632 = vmul.f32 %v631, %v628
      %v633 = vmul.f32 %v631, %v629
      %v634 = vadd.f32 %v626, %v632
      %v635 = vadd.f32 %v627, %v633
      %v636 = vld [vmem:[%s206] sm:$0xff]
      %v637 = vld [vmem:[%s206 + $0x8] sm:$0xf]
      %v638 = vld [vmem:[%s1 + $0x1] sm:$0x1]
      %v639 = vperm.slane %v638, 0
      %v640 = vmul.f32 %v639, %v636
      %v641 = vmul.f32 %v639, %v637
      %v642 = vadd.f32 %v634, %v640
      %v643 = vadd.f32 %v635, %v641
      %v644 = vld [vmem:[%s206 + $0x1] sm:$0xff]
      %v645 = vld [vmem:[%s206 + $0x9] sm:$0xf]
      %v646 = vld [vmem:[%s1 + $0x6] sm:$0x1]
      %v647 = vperm.slane %v646, 0
      %v648 = vmul.f32 %v647, %v644
      %v649 = vmul.f32 %v647, %v645
      %v650 = vadd.f32 %v642, %v648
      %v651 = vadd.f32 %v643, %v649
      %v652 = vld [vmem:[%s206 + $0x2] sm:$0xff]
      %v653 = vld [vmem:[%s206 + $0xa] sm:$0xf]
      %v654 = vld [vmem:[%s1 + $0xb] sm:$0x1]
      %v655 = vperm.slane %v654, 0
      %v656 = vmul.f32 %v655, %v652
      %v657 = vmul.f32 %v655, %v653
      %v658 = vadd.f32 %v650, %v656
      %v659 = vadd.f32 %v651, %v657
      %v660 = vld [vmem:[%s206 + $0x3] sm:$0xff]
      %v661 = vld [vmem:[%s206 + $0xb] sm:$0xf]
      %v662 = vld [vmem:[%s1 + $0x10] sm:$0x1]
      %v663 = vperm.slane %v662, 0
      %v664 = vmul.f32 %v663, %v660
      %v665 = vmul.f32 %v663, %v661
      %v666 = vadd.f32 %v658, %v664
      %v667 = vadd.f32 %v659, %v665
      %v668 = vld [vmem:[%s206 + $0x4] sm:$0xff]
      %v669 = vld [vmem:[%s206 + $0xc] sm:$0xf]
      %v670 = vld [vmem:[%s1 + $0x15] sm:$0x1]
      %v671 = vperm.slane %v670, 0
      %v672 = vmul.f32 %v671, %v668
      %v673 = vmul.f32 %v671, %v669
      %v674 = vadd.f32 %v666, %v672
      %v675 = vadd.f32 %v667, %v673
      %v676 = vld [vmem:[%s235] sm:$0xff]
      %v677 = vld [vmem:[%s235 + $0x8] sm:$0xf]
      %v678 = vld [vmem:[%s1 + $0x2] sm:$0x1]
      %v679 = vperm.slane %v678, 0
      %v680 = vmul.f32 %v679, %v676
      %v681 = vmul.f32 %v679, %v677
      %v682 = vadd.f32 %v674, %v680
      %v683 = vadd.f32 %v675, %v681
      %v684 = vld [vmem:[%s235 + $0x1] sm:$0xff]
      %v685 = vld [vmem:[%s235 + $0x9] sm:$0xf]
      %v686 = vld [vmem:[%s1 + $0x7] sm:$0x1]
      %v687 = vperm.slane %v686, 0
      %v688 = vmul.f32 %v687, %v684
      %v689 = vmul.f32 %v687, %v685
      %v690 = vadd.f32 %v682, %v688
      %v691 = vadd.f32 %v683, %v689
      %v692 = vld [vmem:[%s235 + $0x2] sm:$0xff]
      %v693 = vld [vmem:[%s235 + $0xa] sm:$0xf]
      %v694 = vld [vmem:[%s1 + $0xc] sm:$0x1]
      %v695 = vperm.slane %v694, 0
      %v696 = vmul.f32 %v695, %v692
      %v697 = vmul.f32 %v695, %v693
      %v698 = vadd.f32 %v690, %v696
      %v699 = vadd.f32 %v691, %v697
      %v700 = vld [vmem:[%s235 + $0x3] sm:$0xff]
      %v701 = vld [vmem:[%s235 + $0xb] sm:$0xf]
      %v702 = vld [vmem:[%s1 + $0x11] sm:$0x1]
      %v703 = vperm.slane %v702, 0
      %v704 = vmul.f32 %v703, %v700
      %v705 = vmul.f32 %v703, %v701
      %v706 = vadd.f32 %v698, %v704
      %v707 = vadd.f32 %v699, %v705
      %v708 = vld [vmem:[%s235 + $0x4] sm:$0xff]
      %v709 = vld [vmem:[%s235 + $0xc] sm:$0xf]
      %v710 = vld [vmem:[%s1 + $0x16] sm:$0x1]
      %v711 = vperm.slane %v710, 0
      %v712 = vmul.f32 %v711, %v708
      %v713 = vmul.f32 %v711, %v709
      %v714 = vadd.f32 %v706, %v712
      %v715 = vadd.f32 %v707, %v713
      %v716 = vld [vmem:[%s264] sm:$0xff]
      %v717 = vld [vmem:[%s264 + $0x8] sm:$0xf]
      %v718 = vld [vmem:[%s1 + $0x3] sm:$0x1]
      %v719 = vperm.slane %v718, 0
      %v720 = vmul.f32 %v719, %v716
      %v721 = vmul.f32 %v719, %v717
      %v722 = vadd.f32 %v714, %v720
      %v723 = vadd.f32 %v715, %v721
      %v724 = vld [vmem:[%s264 + $0x1] sm:$0xff]
      %v725 = vld [vmem:[%s264 + $0x9] sm:$0xf]
      %v726 = vld [vmem:[%s1 + $0x8] sm:$0x1]
      %v727 = vperm.slane %v726, 0
      %v728 = vmul.f32 %v727, %v724
      %v729 = vmul.f32 %v727, %v725
      %v730 = vadd.f32 %v722, %v728
      %v731 = vadd.f32 %v723, %v729
      %v732 = vld [vmem:[%s264 + $0x2] sm:$0xff]
      %v733 = vld [vmem:[%s264 + $0xa] sm:$0xf]
      %v734 = vld [vmem:[%s1 + $0xd] sm:$0x1]
      %v735 = vperm.slane %v734, 0
      %v736 = vmul.f32 %v735, %v732
      %v737 = vmul.f32 %v735, %v733
      %v738 = vadd.f32 %v730, %v736
      %v739 = vadd.f32 %v731, %v737
      %v740 = vld [vmem:[%s264 + $0x3] sm:$0xff]
      %v741 = vld [vmem:[%s264 + $0xb] sm:$0xf]
      %v742 = vld [vmem:[%s1 + $0x12] sm:$0x1]
      %v743 = vperm.slane %v742, 0
      %v744 = vmul.f32 %v743, %v740
      %v745 = vmul.f32 %v743, %v741
      %v746 = vadd.f32 %v738, %v744
      %v747 = vadd.f32 %v739, %v745
      %v748 = vld [vmem:[%s264 + $0x4] sm:$0xff]
      %v749 = vld [vmem:[%s264 + $0xc] sm:$0xf]
      %v750 = vld [vmem:[%s1 + $0x17] sm:$0x1]
      %v751 = vperm.slane %v750, 0
      %v752 = vmul.f32 %v751, %v748
      %v753 = vmul.f32 %v751, %v749
      %v754 = vadd.f32 %v746, %v752
      %v755 = vadd.f32 %v747, %v753
      %v756 = vld [vmem:[%s293] sm:$0xff]
      %v757 = vld [vmem:[%s293 + $0x8] sm:$0xf]
      %v758 = vld [vmem:[%s1 + $0x4] sm:$0x1]
      %v759 = vperm.slane %v758, 0
      %v760 = vmul.f32 %v759, %v756
      %v761 = vmul.f32 %v759, %v757
      %v762 = vadd.f32 %v754, %v760
      %v763 = vadd.f32 %v755, %v761
      %v764 = vld [vmem:[%s293 + $0x1] sm:$0xff]
      %v765 = vld [vmem:[%s293 + $0x9] sm:$0xf]
      %v766 = vld [vmem:[%s1 + $0x9] sm:$0x1]
      %v767 = vperm.slane %v766, 0
      %v768 = vmul.f32 %v767, %v764
      %v769 = vmul.f32 %v767, %v765
      %v770 = vadd.f32 %v762, %v768
      %v771 = vadd.f32 %v763, %v769
      %v772 = vld [vmem:[%s293 + $0x2] sm:$0xff]
      %v773 = vld [vmem:[%s293 + $0xa] sm:$0xf]
      %v774 = vld [vmem:[%s1 + $0xe] sm:$0x1]
      %v775 = vperm.slane %v774, 0
      %v776 = vmul.f32 %v775, %v772
      %v777 = vmul.f32 %v775, %v773
      %v778 = vadd.f32 %v770, %v776
      %v779 = vadd.f32 %v771, %v777
      %v780 = vld [vmem:[%s293 + $0x3] sm:$0xff]
      %v781 = vld [vmem:[%s293 + $0xb] sm:$0xf]
      %v782 = vld [vmem:[%s1 + $0x13] sm:$0x1]
      %v783 = vperm.slane %v782, 0
      %v784 = vmul.f32 %v783, %v780
      %v785 = vmul.f32 %v783, %v781
      %v786 = vadd.f32 %v778, %v784
      %v787 = vadd.f32 %v779, %v785
      %v788 = vld [vmem:[%s293 + $0x4] sm:$0xff]
      %v789 = vld [vmem:[%s293 + $0xc] sm:$0xf]
      %v790 = vld [vmem:[%s1 + $0x18] sm:$0x1]
      %v791 = vperm.slane %v790, 0
      %v792 = vmul.f32 %v791, %v788
      %v793 = vmul.f32 %v791, %v789
      %v794 = vadd.f32 %v786, %v792
      %v795 = vadd.f32 %v787, %v793
      %v796 = vld [vmem:[%s315] sm:$0xff]
      %v797 = vld [vmem:[%s315 + $0x8] sm:$0xf]
      %v798 = vld [vmem:[%s1 + $0x19] sm:$0x1]
      %v799 = vperm.slane %v798, 0
      %v800 = vmul.f32 %v799, %v796
      %v801 = vmul.f32 %v799, %v797
      %v802 = vadd.f32 %v794, %v800
      %v803 = vadd.f32 %v795, %v801
      %v804 = vld [vmem:[%s315 + $0x1] sm:$0xff]
      %v805 = vld [vmem:[%s315 + $0x9] sm:$0xf]
      %v806 = vld [vmem:[%s1 + $0x1e] sm:$0x1]
      %v807 = vperm.slane %v806, 0
      %v808 = vmul.f32 %v807, %v804
      %v809 = vmul.f32 %v807, %v805
      %v810 = vadd.f32 %v802, %v808
      %v811 = vadd.f32 %v803, %v809
      %v812 = vld [vmem:[%s315 + $0x2] sm:$0xff]
      %v813 = vld [vmem:[%s315 + $0xa] sm:$0xf]
      %v814 = vld [vmem:[%s1 + $0x23] sm:$0x1]
      %v815 = vperm.slane %v814, 0
      %v816 = vmul.f32 %v815, %v812
      %v817 = vmul.f32 %v815, %v813
      %v818 = vadd.f32 %v810, %v816
      %v819 = vadd.f32 %v811, %v817
      %v820 = vld [vmem:[%s315 + $0x3] sm:$0xff]
      %v821 = vld [vmem:[%s315 + $0xb] sm:$0xf]
      %v822 = vld [vmem:[%s1 + $0x28] sm:$0x1]
      %v823 = vperm.slane %v822, 0
      %v824 = vmul.f32 %v823, %v820
      %v825 = vmul.f32 %v823, %v821
      %v826 = vadd.f32 %v818, %v824
      %v827 = vadd.f32 %v819, %v825
      %v828 = vld [vmem:[%s315 + $0x4] sm:$0xff]
      %v829 = vld [vmem:[%s315 + $0xc] sm:$0xf]
      %v830 = vld [vmem:[%s1 + $0x2d] sm:$0x1]
      %v831 = vperm.slane %v830, 0
      %v832 = vmul.f32 %v831, %v828
      %v833 = vmul.f32 %v831, %v829
      %v834 = vadd.f32 %v826, %v832
      %v835 = vadd.f32 %v827, %v833
      %v836 = vld [vmem:[%s346] sm:$0xff]
      %v837 = vld [vmem:[%s346 + $0x8] sm:$0xf]
      %v838 = vld [vmem:[%s1 + $0x1a] sm:$0x1]
      %v839 = vperm.slane %v838, 0
      %v840 = vmul.f32 %v839, %v836
      %v841 = vmul.f32 %v839, %v837
      %v842 = vadd.f32 %v834, %v840
      %v843 = vadd.f32 %v835, %v841
      %v844 = vld [vmem:[%s346 + $0x1] sm:$0xff]
      %v845 = vld [vmem:[%s346 + $0x9] sm:$0xf]
      %v846 = vld [vmem:[%s1 + $0x1f] sm:$0x1]
      %v847 = vperm.slane %v846, 0
      %v848 = vmul.f32 %v847, %v844
      %v849 = vmul.f32 %v847, %v845
      %v850 = vadd.f32 %v842, %v848
      %v851 = vadd.f32 %v843, %v849
      %v852 = vld [vmem:[%s346 + $0x2] sm:$0xff]
      %v853 = vld [vmem:[%s346 + $0xa] sm:$0xf]
      %v854 = vld [vmem:[%s1 + $0x24] sm:$0x1]
      %v855 = vperm.slane %v854, 0
      %v856 = vmul.f32 %v855, %v852
      %v857 = vmul.f32 %v855, %v853
      %v858 = vadd.f32 %v850, %v856
      %v859 = vadd.f32 %v851, %v857
      %v860 = vld [vmem:[%s346 + $0x3] sm:$0xff]
      %v861 = vld [vmem:[%s346 + $0xb] sm:$0xf]
      %v862 = vld [vmem:[%s1 + $0x29] sm:$0x1]
      %v863 = vperm.slane %v862, 0
      %v864 = vmul.f32 %v863, %v860
      %v865 = vmul.f32 %v863, %v861
      %v866 = vadd.f32 %v858, %v864
      %v867 = vadd.f32 %v859, %v865
      %v868 = vld [vmem:[%s346 + $0x4] sm:$0xff]
      %v869 = vld [vmem:[%s346 + $0xc] sm:$0xf]
      %v870 = vld [vmem:[%s1 + $0x2e] sm:$0x1]
      %v871 = vperm.slane %v870, 0
      %v872 = vmul.f32 %v871, %v868
      %v873 = vmul.f32 %v871, %v869
      %v874 = vadd.f32 %v866, %v872
      %v875 = vadd.f32 %v867, %v873
      %v876 = vld [vmem:[%s375] sm:$0xff]
      %v877 = vld [vmem:[%s375 + $0x8] sm:$0xf]
      %v878 = vld [vmem:[%s1 + $0x1b] sm:$0x1]
      %v879 = vperm.slane %v878, 0
      %v880 = vmul.f32 %v879, %v876
      %v881 = vmul.f32 %v879, %v877
      %v882 = vadd.f32 %v874, %v880
      %v883 = vadd.f32 %v875, %v881
      %v884 = vld [vmem:[%s375 + $0x1] sm:$0xff]
      %v885 = vld [vmem:[%s375 + $0x9] sm:$0xf]
      %v886 = vld [vmem:[%s1 + $0x20] sm:$0x1]
      %v887 = vperm.slane %v886, 0
      %v888 = vmul.f32 %v887, %v884
      %v889 = vmul.f32 %v887, %v885
      %v890 = vadd.f32 %v882, %v888
      %v891 = vadd.f32 %v883, %v889
      %v892 = vld [vmem:[%s375 + $0x2] sm:$0xff]
      %v893 = vld [vmem:[%s375 + $0xa] sm:$0xf]
      %v894 = vld [vmem:[%s1 + $0x25] sm:$0x1]
      %v895 = vperm.slane %v894, 0
      %v896 = vmul.f32 %v895, %v892
      %v897 = vmul.f32 %v895, %v893
      %v898 = vadd.f32 %v890, %v896
      %v899 = vadd.f32 %v891, %v897
      %v900 = vld [vmem:[%s375 + $0x3] sm:$0xff]
      %v901 = vld [vmem:[%s375 + $0xb] sm:$0xf]
      %v902 = vld [vmem:[%s1 + $0x2a] sm:$0x1]
      %v903 = vperm.slane %v902, 0
      %v904 = vmul.f32 %v903, %v900
      %v905 = vmul.f32 %v903, %v901
      %v906 = vadd.f32 %v898, %v904
      %v907 = vadd.f32 %v899, %v905
      %v908 = vld [vmem:[%s375 + $0x4] sm:$0xff]
      %v909 = vld [vmem:[%s375 + $0xc] sm:$0xf]
      %v910 = vld [vmem:[%s1 + $0x2f] sm:$0x1]
      %v911 = vperm.slane %v910, 0
      %v912 = vmul.f32 %v911, %v908
      %v913 = vmul.f32 %v911, %v909
      %v914 = vadd.f32 %v906, %v912
      %v915 = vadd.f32 %v907, %v913
      %v916 = vld [vmem:[%s404] sm:$0xff]
      %v917 = vld [vmem:[%s404 + $0x8] sm:$0xf]
      %v918 = vld [vmem:[%s1 + $0x1c] sm:$0x1]
      %v919 = vperm.slane %v918, 0
      %v920 = vmul.f32 %v919, %v916
      %v921 = vmul.f32 %v919, %v917
      %v922 = vadd.f32 %v914, %v920
      %v923 = vadd.f32 %v915, %v921
      %v924 = vld [vmem:[%s404 + $0x1] sm:$0xff]
      %v925 = vld [vmem:[%s404 + $0x9] sm:$0xf]
      %v926 = vld [vmem:[%s1 + $0x21] sm:$0x1]
      %v927 = vperm.slane %v926, 0
      %v928 = vmul.f32 %v927, %v924
      %v929 = vmul.f32 %v927, %v925
      %v930 = vadd.f32 %v922, %v928
      %v931 = vadd.f32 %v923, %v929
      %v932 = vld [vmem:[%s404 + $0x2] sm:$0xff]
      %v933 = vld [vmem:[%s404 + $0xa] sm:$0xf]
      %v934 = vld [vmem:[%s1 + $0x26] sm:$0x1]
      %v935 = vperm.slane %v934, 0
      %v936 = vmul.f32 %v935, %v932
      %v937 = vmul.f32 %v935, %v933
      %v938 = vadd.f32 %v930, %v936
      %v939 = vadd.f32 %v931, %v937
      %v940 = vld [vmem:[%s404 + $0x3] sm:$0xff]
      %v941 = vld [vmem:[%s404 + $0xb] sm:$0xf]
      %v942 = vld [vmem:[%s1 + $0x2b] sm:$0x1]
      %v943 = vperm.slane %v942, 0
      %v944 = vmul.f32 %v943, %v940
      %v945 = vmul.f32 %v943, %v941
      %v946 = vadd.f32 %v938, %v944
      %v947 = vadd.f32 %v939, %v945
      %v948 = vld [vmem:[%s404 + $0x4] sm:$0xff]
      %v949 = vld [vmem:[%s404 + $0xc] sm:$0xf]
      %v950 = vld [vmem:[%s1 + $0x30] sm:$0x1]
      %v951 = vperm.slane %v950, 0
      %v952 = vmul.f32 %v951, %v948
      %v953 = vmul.f32 %v951, %v949
      %v954 = vadd.f32 %v946, %v952
      %v955 = vadd.f32 %v947, %v953
      %v956 = vld [vmem:[%s433] sm:$0xff]
      %v957 = vld [vmem:[%s433 + $0x8] sm:$0xf]
      %v958 = vld [vmem:[%s1 + $0x1d] sm:$0x1]
      %v959 = vperm.slane %v958, 0
      %v960 = vmul.f32 %v959, %v956
      %v961 = vmul.f32 %v959, %v957
      %v962 = vadd.f32 %v954, %v960
      %v963 = vadd.f32 %v955, %v961
      %v964 = vld [vmem:[%s433 + $0x1] sm:$0xff]
      %v965 = vld [vmem:[%s433 + $0x9] sm:$0xf]
      %v966 = vld [vmem:[%s1 + $0x22] sm:$0x1]
      %v967 = vperm.slane %v966, 0
      %v968 = vmul.f32 %v967, %v964
      %v969 = vmul.f32 %v967, %v965
      %v970 = vadd.f32 %v962, %v968
      %v971 = vadd.f32 %v963, %v969
      %v972 = vld [vmem:[%s433 + $0x2] sm:$0xff]
      %v973 = vld [vmem:[%s433 + $0xa] sm:$0xf]
      %v974 = vld [vmem:[%s1 + $0x27] sm:$0x1]
      %v975 = vperm.slane %v974, 0
      %v976 = vmul.f32 %v975, %v972
      %v977 = vmul.f32 %v975, %v973
      %v978 = vadd.f32 %v970, %v976
      %v979 = vadd.f32 %v971, %v977
      %v980 = vld [vmem:[%s433 + $0x3] sm:$0xff]
      %v981 = vld [vmem:[%s433 + $0xb] sm:$0xf]
      %v982 = vld [vmem:[%s1 + $0x2c] sm:$0x1]
      %v983 = vperm.slane %v982, 0
      %v984 = vmul.f32 %v983, %v980
      %v985 = vmul.f32 %v983, %v981
      %v986 = vadd.f32 %v978, %v984
      %v987 = vadd.f32 %v979, %v985
      %v988 = vld [vmem:[%s433 + $0x4] sm:$0xff]
      %v989 = vld [vmem:[%s433 + $0xc] sm:$0xf]
      %v990 = vld [vmem:[%s1 + $0x31] sm:$0x1]
      %v991 = vperm.slane %v990, 0
      %v992 = vmul.f32 %v991, %v988
      %v993 = vmul.f32 %v991, %v989
      %v994 = vadd.f32 %v986, %v992
      %v995 = vadd.f32 %v987, %v993
      %v996 = vld [vmem:[%s455] sm:$0xff]
      %v997 = vld [vmem:[%s455 + $0x8] sm:$0xf]
      %v998 = vld [vmem:[%s1 + $0x32] sm:$0x1]
      %v999 = vperm.slane %v998, 0
      %v1000 = vmul.f32 %v999, %v996
      %v1001 = vmul.f32 %v999, %v997
      %v1002 = vadd.f32 %v994, %v1000
      %v1003 = vadd.f32 %v995, %v1001
      %v1004 = vld [vmem:[%s455 + $0x1] sm:$0xff]
      %v1005 = vld [vmem:[%s455 + $0x9] sm:$0xf]
      %v1006 = vld [vmem:[%s1 + $0x37] sm:$0x1]
      %v1007 = vperm.slane %v1006, 0
      %v1008 = vmul.f32 %v1007, %v1004
      %v1009 = vmul.f32 %v1007, %v1005
      %v1010 = vadd.f32 %v1002, %v1008
      %v1011 = vadd.f32 %v1003, %v1009
      %v1012 = vld [vmem:[%s455 + $0x2] sm:$0xff]
      %v1013 = vld [vmem:[%s455 + $0xa] sm:$0xf]
      %v1014 = vld [vmem:[%s1 + $0x3c] sm:$0x1]
      %v1015 = vperm.slane %v1014, 0
      %v1016 = vmul.f32 %v1015, %v1012
      %v1017 = vmul.f32 %v1015, %v1013
      %v1018 = vadd.f32 %v1010, %v1016
      %v1019 = vadd.f32 %v1011, %v1017
      %v1020 = vld [vmem:[%s455 + $0x3] sm:$0xff]
      %v1021 = vld [vmem:[%s455 + $0xb] sm:$0xf]
      %v1022 = vld [vmem:[%s1 + $0x41] sm:$0x1]
      %v1023 = vperm.slane %v1022, 0
      %v1024 = vmul.f32 %v1023, %v1020
      %v1025 = vmul.f32 %v1023, %v1021
      %v1026 = vadd.f32 %v1018, %v1024
      %v1027 = vadd.f32 %v1019, %v1025
      %v1028 = vld [vmem:[%s455 + $0x4] sm:$0xff]
      %v1029 = vld [vmem:[%s455 + $0xc] sm:$0xf]
      %v1030 = vld [vmem:[%s1 + $0x46] sm:$0x1]
      %v1031 = vperm.slane %v1030, 0
      %v1032 = vmul.f32 %v1031, %v1028
      %v1033 = vmul.f32 %v1031, %v1029
      %v1034 = vadd.f32 %v1026, %v1032
      %v1035 = vadd.f32 %v1027, %v1033
      %v1036 = vld [vmem:[%s486] sm:$0xff]
      %v1037 = vld [vmem:[%s486 + $0x8] sm:$0xf]
      %v1038 = vld [vmem:[%s1 + $0x33] sm:$0x1]
      %v1039 = vperm.slane %v1038, 0
      %v1040 = vmul.f32 %v1039, %v1036
      %v1041 = vmul.f32 %v1039, %v1037
      %v1042 = vadd.f32 %v1034, %v1040
      %v1043 = vadd.f32 %v1035, %v1041
      %v1044 = vld [vmem:[%s486 + $0x1] sm:$0xff]
      %v1045 = vld [vmem:[%s486 + $0x9] sm:$0xf]
      %v1046 = vld [vmem:[%s1 + $0x38] sm:$0x1]
      %v1047 = vperm.slane %v1046, 0
      %v1048 = vmul.f32 %v1047, %v1044
      %v1049 = vmul.f32 %v1047, %v1045
      %v1050 = vadd.f32 %v1042, %v1048
      %v1051 = vadd.f32 %v1043, %v1049
      %v1052 = vld [vmem:[%s486 + $0x2] sm:$0xff]
      %v1053 = vld [vmem:[%s486 + $0xa] sm:$0xf]
      %v1054 = vld [vmem:[%s1 + $0x3d] sm:$0x1]
      %v1055 = vperm.slane %v1054, 0
      %v1056 = vmul.f32 %v1055, %v1052
      %v1057 = vmul.f32 %v1055, %v1053
      %v1058 = vadd.f32 %v1050, %v1056
      %v1059 = vadd.f32 %v1051, %v1057
      %v1060 = vld [vmem:[%s486 + $0x3] sm:$0xff]
      %v1061 = vld [vmem:[%s486 + $0xb] sm:$0xf]
      %v1062 = vld [vmem:[%s1 + $0x42] sm:$0x1]
      %v1063 = vperm.slane %v1062, 0
      %v1064 = vmul.f32 %v1063, %v1060
      %v1065 = vmul.f32 %v1063, %v1061
      %v1066 = vadd.f32 %v1058, %v1064
      %v1067 = vadd.f32 %v1059, %v1065
      %v1068 = vld [vmem:[%s486 + $0x4] sm:$0xff]
      %v1069 = vld [vmem:[%s486 + $0xc] sm:$0xf]
      %v1070 = vld [vmem:[%s1 + $0x47] sm:$0x1]
      %v1071 = vperm.slane %v1070, 0
      %v1072 = vmul.f32 %v1071, %v1068
      %v1073 = vmul.f32 %v1071, %v1069
      %v1074 = vadd.f32 %v1066, %v1072
      %v1075 = vadd.f32 %v1067, %v1073
      %v1076 = vld [vmem:[%s515] sm:$0xff]
      %v1077 = vld [vmem:[%s515 + $0x8] sm:$0xf]
      %v1078 = vld [vmem:[%s1 + $0x34] sm:$0x1]
      %v1079 = vperm.slane %v1078, 0
      %v1080 = vmul.f32 %v1079, %v1076
      %v1081 = vmul.f32 %v1079, %v1077
      %v1082 = vadd.f32 %v1074, %v1080
      %v1083 = vadd.f32 %v1075, %v1081
      %v1084 = vld [vmem:[%s515 + $0x1] sm:$0xff]
      %v1085 = vld [vmem:[%s515 + $0x9] sm:$0xf]
      %v1086 = vld [vmem:[%s1 + $0x39] sm:$0x1]
      %v1087 = vperm.slane %v1086, 0
      %v1088 = vmul.f32 %v1087, %v1084
      %v1089 = vmul.f32 %v1087, %v1085
      %v1090 = vadd.f32 %v1082, %v1088
      %v1091 = vadd.f32 %v1083, %v1089
      %v1092 = vld [vmem:[%s515 + $0x2] sm:$0xff]
      %v1093 = vld [vmem:[%s515 + $0xa] sm:$0xf]
      %v1094 = vld [vmem:[%s1 + $0x3e] sm:$0x1]
      %v1095 = vperm.slane %v1094, 0
      %v1096 = vmul.f32 %v1095, %v1092
      %v1097 = vmul.f32 %v1095, %v1093
      %v1098 = vadd.f32 %v1090, %v1096
      %v1099 = vadd.f32 %v1091, %v1097
      %v1100 = vld [vmem:[%s515 + $0x3] sm:$0xff]
      %v1101 = vld [vmem:[%s515 + $0xb] sm:$0xf]
      %v1102 = vld [vmem:[%s1 + $0x43] sm:$0x1]
      %v1103 = vperm.slane %v1102, 0
      %v1104 = vmul.f32 %v1103, %v1100
      %v1105 = vmul.f32 %v1103, %v1101
      %v1106 = vadd.f32 %v1098, %v1104
      %v1107 = vadd.f32 %v1099, %v1105
      %v1108 = vld [vmem:[%s515 + $0x4] sm:$0xff]
      %v1109 = vld [vmem:[%s515 + $0xc] sm:$0xf]
      %v1110 = vld [vmem:[%s1 + $0x48] sm:$0x1]
      %v1111 = vperm.slane %v1110, 0
      %v1112 = vmul.f32 %v1111, %v1108
      %v1113 = vmul.f32 %v1111, %v1109
      %v1114 = vadd.f32 %v1106, %v1112
      %v1115 = vadd.f32 %v1107, %v1113
      %v1116 = vld [vmem:[%s544] sm:$0xff]
      %v1117 = vld [vmem:[%s544 + $0x8] sm:$0xf]
      %v1118 = vld [vmem:[%s1 + $0x35] sm:$0x1]
      %v1119 = vperm.slane %v1118, 0
      %v1120 = vmul.f32 %v1119, %v1116
      %v1121 = vmul.f32 %v1119, %v1117
      %v1122 = vadd.f32 %v1114, %v1120
      %v1123 = vadd.f32 %v1115, %v1121
      %v1124 = vld [vmem:[%s544 + $0x1] sm:$0xff]
      %v1125 = vld [vmem:[%s544 + $0x9] sm:$0xf]
      %v1126 = vld [vmem:[%s1 + $0x3a] sm:$0x1]
      %v1127 = vperm.slane %v1126, 0
      %v1128 = vmul.f32 %v1127, %v1124
      %v1129 = vmul.f32 %v1127, %v1125
      %v1130 = vadd.f32 %v1122, %v1128
      %v1131 = vadd.f32 %v1123, %v1129
      %v1132 = vld [vmem:[%s544 + $0x2] sm:$0xff]
      %v1133 = vld [vmem:[%s544 + $0xa] sm:$0xf]
      %v1134 = vld [vmem:[%s1 + $0x3f] sm:$0x1]
      %v1135 = vperm.slane %v1134, 0
      %v1136 = vmul.f32 %v1135, %v1132
      %v1137 = vmul.f32 %v1135, %v1133
      %v1138 = vadd.f32 %v1130, %v1136
      %v1139 = vadd.f32 %v1131, %v1137
      %v1140 = vld [vmem:[%s544 + $0x3] sm:$0xff]
      %v1141 = vld [vmem:[%s544 + $0xb] sm:$0xf]
      %v1142 = vld [vmem:[%s1 + $0x44] sm:$0x1]
      %v1143 = vperm.slane %v1142, 0
      %v1144 = vmul.f32 %v1143, %v1140
      %v1145 = vmul.f32 %v1143, %v1141
      %v1146 = vadd.f32 %v1138, %v1144
      %v1147 = vadd.f32 %v1139, %v1145
      %v1148 = vld [vmem:[%s544 + $0x4] sm:$0xff]
      %v1149 = vld [vmem:[%s544 + $0xc] sm:$0xf]
      %v1150 = vld [vmem:[%s1 + $0x49] sm:$0x1]
      %v1151 = vperm.slane %v1150, 0
      %v1152 = vmul.f32 %v1151, %v1148
      %v1153 = vmul.f32 %v1151, %v1149
      %v1154 = vadd.f32 %v1146, %v1152
      %v1155 = vadd.f32 %v1147, %v1153
      %v1156 = vld [vmem:[%s573] sm:$0xff]
      %v1157 = vld [vmem:[%s573 + $0x8] sm:$0xf]
      %v1158 = vld [vmem:[%s1 + $0x36] sm:$0x1]
      %v1159 = vperm.slane %v1158, 0
      %v1160 = vmul.f32 %v1159, %v1156
      %v1161 = vmul.f32 %v1159, %v1157
      %v1162 = vadd.f32 %v1154, %v1160
      %v1163 = vadd.f32 %v1155, %v1161
      %v1164 = vld [vmem:[%s573 + $0x1] sm:$0xff]
      %v1165 = vld [vmem:[%s573 + $0x9] sm:$0xf]
      %v1166 = vld [vmem:[%s1 + $0x3b] sm:$0x1]
      %v1167 = vperm.slane %v1166, 0
      %v1168 = vmul.f32 %v1167, %v1164
      %v1169 = vmul.f32 %v1167, %v1165
      %v1170 = vadd.f32 %v1162, %v1168
      %v1171 = vadd.f32 %v1163, %v1169
      %v1172 = vld [vmem:[%s573 + $0x2] sm:$0xff]
      %v1173 = vld [vmem:[%s573 + $0xa] sm:$0xf]
      %v1174 = vld [vmem:[%s1 + $0x40] sm:$0x1]
      %v1175 = vperm.slane %v1174, 0
      %v1176 = vmul.f32 %v1175, %v1172
      %v1177 = vmul.f32 %v1175, %v1173
      %v1178 = vadd.f32 %v1170, %v1176
      %v1179 = vadd.f32 %v1171, %v1177
      %v1180 = vld [vmem:[%s573 + $0x3] sm:$0xff]
      %v1181 = vld [vmem:[%s573 + $0xb] sm:$0xf]
      %v1182 = vld [vmem:[%s1 + $0x45] sm:$0x1]
      %v1183 = vperm.slane %v1182, 0
      %v1184 = vmul.f32 %v1183, %v1180
      %v1185 = vmul.f32 %v1183, %v1181
      %v1186 = vadd.f32 %v1178, %v1184
      %v1187 = vadd.f32 %v1179, %v1185
      %v1188 = vld [vmem:[%s573 + $0x4] sm:$0xff]
      %v1189 = vld [vmem:[%s573 + $0xc] sm:$0xf]
      %v1190 = vld [vmem:[%s1 + $0x4a] sm:$0x1]
      %v1191 = vperm.slane %v1190, 0
      %v1192 = vmul.f32 %v1191, %v1188
      %v1193 = vmul.f32 %v1191, %v1189
      %v1194 = vadd.f32 %v1186, %v1192
      %v1195 = vadd.f32 %v1187, %v1193
      %v1196 = vsub.f32 %v1194, %v1194
      %v1197 = vsub.f32 %v1195, %v1195
      %v1198 = vmax.f32 %v1196, 0.0
      %v1199 = vmax.f32 %v1197, 0.0
      %vm1200 = vcmask 293888
      %1201 = vst.msk [vmem:[#allocation3] sm:$0xff] %vm1200, %v1198
      %vm1202 = vcmask 289792
      %1203 = vst.msk [vmem:[#allocation3 + $0x8] sm:$0xf] %vm1202, %v1199
      %v1204 = vld [vmem:[#allocation3] sm:$0xff]
      %v1205 = vld [vmem:[#allocation3 + $0x8] sm:$0xf]
      %1206 = vst.msk [vmem:[%s170] sm:$0xff] %vm173, %v1204
      %vm1207 = vcmask 93184
      %1208 = vst.msk [vmem:[%s170 + $0x8] sm:$0xf] %vm1207, %v1205
      %v1209 = vld [vmem:[#allocation3] sm:$0xff]
      %v1210 = vld [vmem:[#allocation3 + $0x8] sm:$0xf]
      %1213 = vrot.lane.b32.xlu0 %v1209, 116
      %v1214 = vpop.permute.xlu0 %1213
      %1215 = vrot.lane.b32.xlu0 %v1210, 116
      %v1216 = vpop.permute.xlu0 %1215
      %s1219 = scalar_lea.vmem %s170, 16
      %1220 = vst.msk [vmem:[%s1219] sm:$0xff] %vm173, %v1214
      %1221 = vst.msk [vmem:[%s1219 + $0x8] sm:$0xf] %vm1207, %v1216
      %v1222 = vld [vmem:[#allocation3] sm:$0xff]
      %v1223 = vld [vmem:[#allocation3 + $0x8] sm:$0xf]
      %1226 = vrot.lane.b32.xlu0 %v1222, 104
      %v1227 = vpop.permute.xlu0 %1226
      %1228 = vrot.lane.b32.xlu0 %v1223, 104
      %v1229 = vpop.permute.xlu0 %1228
      %s1232 = scalar_lea.vmem %s170, 32
      %1233 = vst.msk [vmem:[%s1232] sm:$0xff] %vm173, %v1227
      %1234 = vst.msk [vmem:[%s1232 + $0x8] sm:$0xf] %vm1207, %v1229
      %p1235 = scmp.lt.s32.totalorder %s14, 1
      %s1236 = scalar_select %p1235, %s14, 1
      %s1237 = smul.addr %s1236, 6
      %s1238 = smul.addr %s1237, 8
      %s1239 = scalar_lea.vmem %s3, %s1238
      // Predicated region
      $region33: #{batched_forward.1} parent=31 // pred_check
        %p1240 = pneg %p100
      $region34: #{batched_forward.1} parent=31 // pred_check_branch
        %1242 = sbr.rel (%p1240) target = $region36
      $region35: #{batched_forward.1} parent=31 // pred_region
        _
      $region36: #{batched_forward.1} parent=31 // pred_fallthru
        _
    $region32: #{batched_forward.1} parent=5 // pred_fallthru
      _
    %p1243 = scmp.le.s32.totalorder 2, %s9
    // Predicated region
    $region37: #{batched_forward.1} parent=5 // pred_check
      %p1244 = pneg %p1243
    $region38: #{batched_forward.1} parent=5 // pred_check_branch
      %1246 = sbr.rel (%p1244) target = $region40
    $region39: #{batched_forward.1} parent=5 // pred_region
      %s1247 = ssub.s32 %s9, 2
      // Predicated region
      $region41: #{batched_forward.1} parent=39 // pred_check
        %p1248 = pneg %p106
      $region42: #{batched_forward.1} parent=39 // pred_check_branch
        %1250 = sbr.rel (%p1248) target = $region44
      $region43: #{batched_forward.1} parent=39 // pred_region
        %p1251 = scmp.lt.s32.totalorder %s15, 1
        %s1252 = scalar_select %p1251, %s15, 1
        %s1253 = smul.addr %s1252, 6
        %s1254 = smul.addr %s1253, 8
        %s1255 = scalar_lea.vmem %s3, %s1254
      $region44: #{batched_forward.1} parent=39 // pred_fallthru
        _
    $region40: #{batched_forward.1} parent=5 // pred_fallthru
      _
  $region6: #{batched_forward.1} parent=0 // loop_footer
    %s13 = sadd.s32 1, %s9
  $region7: #{batched_forward.1} parent=0 // loop_footer_branch
    %8 = sbr.rel target = $region3
  $region8: #{batched_forward.1} parent=0 // loop_exit
    _

</llo_original>
